<compile_context>
chip_gen: v6e
topology: v6e:2x2x1
jax: 0.10.0
libtpu: 0.0.40
codegen_flags: <defaults>
</compile_context>

<pallas_src>
import functools

import jax
import jax.numpy as jnp
from jax.experimental import pallas as pl
from jax.experimental.pallas import tpu as pltpu

LANE = 128           # TPU lane width: all matmul K / N dims are zero-padded to this
SUBLANE = 8          # batch rows padded to a multiple of this
NEG_PAD = -1e30      # bias padding for the last layer -> padded classes vanish in softmax
LEAKY_SLOPE = 0.01   # nn.LeakyReLU default


def calc_conv_output_size(dim, k, s, p):
    return (dim + 2 * p - k) // s + 1


def _round_up(n, m):
    return ((n + m - 1) // m) * m


# ---------------------------------------------------------------------------
# Fused whole-network kernel (one grid step == one contiguous batch chunk)
# ---------------------------------------------------------------------------
def _make_fused_cnn_kernel(*, num_conv, kk, S, n_mlp, softmax_kind, mxu_dtype):
    """Build the fused kernel body (all shapes/loop counts are static)."""

    def kernel(*refs):
        patches_ref = refs[0]
        out_ref = refs[-1]
        conv_refs = [refs[1 + 3 * i: 4 + 3 * i] for i in range(num_conv)]
        base = 1 + 3 * num_conv
        mlp_refs = [refs[base + 2 * j: base + 2 * j + 2] for j in range(n_mlp)]

        def leaky(v):
            return jnp.where(v > 0, v, LEAKY_SLOPE * v)

        # ---- conv layer 1: non-overlapping patchify conv == one MXU matmul,
        #      BatchNorm (eval) folded into per-channel scale/shift.
        w_ref, sc_ref, sh_ref = conv_refs[0]
        y = jnp.dot(patches_ref[0], w_ref[...], preferred_element_type=jnp.float32)
        y = leaky(y * sc_ref[...] + sh_ref[...])

        # ---- conv layers 2..L: sum over the k*k kernel offsets.  Thanks to the
        #      patch-row ordering, each offset is a *contiguous*, 8-row-aligned
        #      block of y, so no transpose/reshape is needed inside the kernel.
        for li in range(1, num_conv):
            w_ref, sc_ref, sh_ref = conv_refs[li]
            rows_out = y.shape[0] // kk
            xl = y.astype(mxu_dtype)
            acc = jnp.dot(xl[0:rows_out, :], w_ref[0],
                          preferred_element_type=jnp.float32)
            for p in range(1, kk):
                acc = acc + jnp.dot(xl[p * rows_out:(p + 1) * rows_out, :], w_ref[p],
                                    preferred_element_type=jnp.float32)
            y = leaky(acc * sc_ref[...] + sh_ref[...])

        # ---- torch.flatten(NCHW) + F.relu + first MLP Linear.
        #      The NCHW (channel-major) flatten permutation is folded into the
        #      weight blocks, so flatten == "one contiguous row block per spatial
        #      position"; bias only (no identity-scale multiply).
        w_ref, b_ref = mlp_refs[0]
        n_rows = y.shape[0] // S
        r = jnp.maximum(y, 0.0).astype(mxu_dtype)
        z = jnp.dot(r[0:n_rows, :], w_ref[0], preferred_element_type=jnp.float32)
        for s in range(1, S):
            z = z + jnp.dot(r[s * n_rows:(s + 1) * n_rows, :], w_ref[s],
                            preferred_element_type=jnp.float32)
        z = z + b_ref[...]
        if n_mlp > 1:
            z = jnp.maximum(z, 0.0)

        # ---- remaining MLP Linears (ReLU between hidden layers, none after last)
        for j in range(1, n_mlp):
            w_ref, b_ref = mlp_refs[j]
            z = jnp.dot(z.astype(mxu_dtype), w_ref[...],
                        preferred_element_type=jnp.float32) + b_ref[...]
            if j < n_mlp - 1:
                z = jnp.maximum(z, 0.0)

        # ---- CNN-level softmax.  Padded class columns carry a -1e30 bias so
        #      exp() underflows to exactly 0; exact divide kept so row sums hold
        #      to 1e-5 (pl.reciprocal(approx=True) would relax that).
        if softmax_kind == "softmax":
            m = jnp.max(z, axis=-1, keepdims=True)
            e = jnp.exp(z - m)
            z = e / jnp.sum(e, axis=-1, keepdims=True)
        elif softmax_kind == "log_softmax":
            m = jnp.max(z, axis=-1, keepdims=True)
            z = (z - m) - jnp.log(jnp.sum(jnp.exp(z - m), axis=-1, keepdims=True))

        out_ref[0] = z.astype(out_ref.dtype)

    return kernel


# ---------------------------------------------------------------------------
# One-time parameter folding / padding (weight-only work, out of the hot path)
# ---------------------------------------------------------------------------
def prepare_fused_cnn(params, *, kernel_size, image_size,
                      cnn_softmax_function="softmax", eps=1e-5,
                      mxu_dtype=jnp.bfloat16):
    k = kernel_size
    kk = k * k
    conv_params = params["conv"]
    mlp_params = params["mlp"]
    num_conv = len(conv_params)
    n_mlp = len(mlp_params)

    d_last = image_size
    for _ in conv_params:
        d_last = calc_conv_output_size(d_last, k, k, 0)
    S = d_last * d_last

    plan = {"conv": [], "mlp": []}

    # --- conv layer 1: plain (K1p, C1p) matmul weight, BN folded in
    w, b, gamma, beta, rm, rv = conv_params[0]
    c_out, c_in = int(w.shape[0]), int(w.shape[1])
    K1 = c_in * kk
    K1p, c_out_p = _round_up(K1, LANE), _round_up(c_out, LANE)
    w2d = w.reshape(c_out, K1).T                                  # rows: (c_in, kh, kw)
    w1p = jnp.zeros((K1p, c_out_p), jnp.float32).at[:K1, :c_out].set(w2d)
    scale = gamma / jnp.sqrt(rv + eps)
    shift = beta + (b - rm) * scale
    plan["conv"].append((
        w1p.astype(mxu_dtype),
        jnp.zeros((1, c_out_p), jnp.float32).at[0, :c_out].set(scale),
        jnp.zeros((1, c_out_p), jnp.float32).at[0, :c_out].set(shift),
    ))
    c_prev, c_prev_p = c_out, c_out_p

    # --- conv layers 2..L: one (C_in_p, C_out_p) block per kernel offset
    for li in range(1, num_conv):
        w, b, gamma, beta, rm, rv = conv_params[li]
        c_out = int(w.shape[0])
        c_out_p = _round_up(c_out, LANE)
        blocks = w.transpose(2, 3, 1, 0).reshape(kk, c_prev, c_out)   # (kh*kw, C_in, C_out)
        wst = (jnp.zeros((kk, c_prev_p, c_out_p), jnp.float32)
               .at[:, :c_prev, :c_out].set(blocks))
        scale = gamma / jnp.sqrt(rv + eps)
        shift = beta + (b - rm) * scale
        plan["conv"].append((
            wst.astype(mxu_dtype),
            jnp.zeros((1, c_out_p), jnp.float32).at[0, :c_out].set(scale),
            jnp.zeros((1, c_out_p), jnp.float32).at[0, :c_out].set(shift),
        ))
        c_prev, c_prev_p = c_out, c_out_p

    # --- MLP layer 1: absorbs torch.flatten's NCHW (channel-major) ordering
    w, b = mlp_params[0]
    h_out = int(w.shape[1])
    h_out_p = _round_up(h_out, LANE)
    assert int(w.shape[0]) == c_prev * S, "mlp input_dim mismatch"
    w_blocks = w.reshape(c_prev, S, h_out).transpose(1, 0, 2)          # (S, C_L, H1)
    wst = (jnp.zeros((S, c_prev_p, h_out_p), jnp.float32)
           .at[:, :c_prev, :h_out].set(w_blocks))
    bias_fill = NEG_PAD if n_mlp == 1 else 0.0
    plan["mlp"].append((
        wst.astype(mxu_dtype),
        jnp.full((1, h_out_p), bias_fill, jnp.float32).at[0, :h_out].set(b),
    ))
    h_prev, h_prev_p = h_out, h_out_p

    for j in range(1, n_mlp):
        w, b = mlp_params[j]
        h_out = int(w.shape[1])
        h_out_p = _round_up(h_out, LANE)
        wp = jnp.zeros((h_prev_p, h_out_p), jnp.float32).at[:h_prev, :h_out].set(w)
        bias_fill = NEG_PAD if j == n_mlp - 1 else 0.0
        plan["mlp"].append((
            wp.astype(mxu_dtype),
            jnp.full((1, h_out_p), bias_fill, jnp.float32).at[0, :h_out].set(b),
        ))
        h_prev, h_prev_p = h_out, h_out_p

    plan["meta"] = dict(num_conv=num_conv, n_mlp=n_mlp, k=k, kk=kk,
                        d_last=d_last, S=S, K1=K1, K1p=K1p,
                        n_classes=h_prev, out_p=h_prev_p,
                        softmax=cnn_softmax_function, mxu_dtype=mxu_dtype)
    return plan


# ---------------------------------------------------------------------------
# Forward pass: one patch rearrangement + ONE pallas_call + one slice
# ---------------------------------------------------------------------------
def _build_patches(x, *, num_conv, k, d_last, n_pad, nb, K1p):
    """Rearrange the NCHW input into the fused kernel's chunked patch tensor.

    Result: (n_chunks, rows_per_chunk, K1p).  Within a chunk, rows are ordered
    (off_2, ..., off_L, pos_h, pos_w, n_in_chunk) so every later conv layer
    consumes one *contiguous* row block per kernel offset (no in-kernel
    transposes); columns are (c_in, kh, kw), zero-padded to K1p lanes.
    """
    N, C, H, W = x.shape
    L = num_conv
    used = d_last * (k ** L)
    x = x[:, :, :used, :used]                      # crop exactly like strided VALID conv
    if n_pad > N:
        x = jnp.pad(x, ((0, n_pad - N), (0, 0), (0, 0), (0, 0)))
    n_chunks = n_pad // nb
    xr = x.reshape((n_chunks, nb, C, d_last) + (k,) * L + (d_last,) + (k,) * L)
    # axes: 0=chunk, 1=n_in_chunk, 2=c, 3=pos_h, 4+L-j = off_j_h,
    #       4+L=pos_w, 5+2L-j = off_j_w ; layer-1 kernel offsets at 3+L / 4+2L.
    perm = [0]
    for j in range(2, L + 1):
        perm += [4 + L - j, 5 + 2 * L - j]         # off_j_h, off_j_w  (j=2 outermost)
    perm += [3, 4 + L, 1]                          # pos_h, pos_w, n_in_chunk
    perm += [2, 3 + L, 4 + 2 * L]                  # c_in, kh, kw (matches conv-1 weight)
    xt = xr.transpose(perm)
    rows = (k ** (2 * (L - 1))) * d_last * d_last * nb
    K1 = C * k * k
    patches = xt.reshape(n_chunks, rows, K1)
    if K1p > K1:
        patches = jnp.pad(patches, ((0, 0), (0, 0), (0, K1p - K1)))
    return patches


def _const_spec(arr):
    """Full-array BlockSpec with a constant index_map: weight fetched once, resident."""
    shp = arr.shape
    return pl.BlockSpec(shp, lambda i: (0,) * len(shp))


def cnn_forward(plan, x, *, batch_block=64):
    meta = plan["meta"]
    N = x.shape[0]
    nb = min(batch_block, _round_up(max(N, SUBLANE), SUBLANE))   # samples per grid step
    n_pad = _round_up(max(N, nb), nb)
    n_chunks = n_pad // nb

    patches = _build_patches(
        x, num_conv=meta["num_conv"], k=meta["k"], d_last=meta["d_last"],
        n_pad=n_pad, nb=nb, K1p=meta["K1p"]).astype(meta["mxu_dtype"])
    rows_per_chunk = patches.shape[1]

    kernel = _make_fused_cnn_kernel(
        num_conv=meta["num_conv"], kk=meta["kk"], S=meta["S"],
        n_mlp=meta["n_mlp"], softmax_kind=meta["softmax"],
        mxu_dtype=meta["mxu_dtype"])

    inputs = [patches]
    in_specs = [pl.BlockSpec((1, rows_per_chunk, meta["K1p"]), lambda i: (i, 0, 0))]
    for t in plan["conv"]:
        for a in t:
            inputs.append(a)
            in_specs.append(_const_spec(a))
    for t in plan["mlp"]:
        for a in t:
            inputs.append(a)
            in_specs.append(_const_spec(a))

    out = pl.pallas_call(
        kernel,
        out_shape=jax.ShapeDtypeStruct((n_chunks, nb, meta["out_p"]), jnp.float32),
        grid=(n_chunks,),
        in_specs=in_specs,
        out_specs=pl.BlockSpec((1, nb, meta["out_p"]), lambda i: (i, 0, 0)),
        compiler_params=pltpu.CompilerParams(
            dimension_semantics=("parallel",)),
    )(*inputs)
    return out.reshape(n_pad, meta["out_p"])[:N, :meta["n_classes"]]


# ---------------------------------------------------------------------------
# Parameters and pure-JAX reference (for correctness checking only)
# ---------------------------------------------------------------------------
def init_params(key, input_channels, hidden_channels, kernel_size,
                mlp_input_dim, mlp_hidden_dims, mlp_output_dim):
    params = {"conv": [], "mlp": []}
    in_ch = input_channels
    for h in hidden_channels:
        key, k1, k2 = jax.random.split(key, 3)
        w = 0.1 * jax.random.normal(k1, (h, in_ch, kernel_size, kernel_size),
                                    jnp.float32)
        b = 0.1 * jax.random.normal(k2, (h,), jnp.float32)
        gamma = jnp.ones((h,), jnp.float32) * 1.1
        beta = jnp.full((h,), 0.05, jnp.float32)
        run_mean = jnp.full((h,), 0.02, jnp.float32)
        run_var = jnp.full((h,), 0.9, jnp.float32)
        params["conv"].append((w, b, gamma, beta, run_mean, run_var))
        in_ch = h
    dims = [mlp_input_dim] + list(mlp_hidden_dims) + [mlp_output_dim]
    for i in range(len(dims) - 1):
        key, k1, k2 = jax.random.split(key, 3)
        w = 0.1 * jax.random.normal(k1, (dims[i], dims[i + 1]), jnp.float32)
        b = 0.1 * jax.random.normal(k2, (dims[i + 1],), jnp.float32)
        params["mlp"].append((w, b))
    return params


def _reference_forward(params, x, *, stride, softmax="softmax", eps=1e-5):
    for (w, b, gamma, beta, rm, rv) in params["conv"]:
        y = jax.lax.conv_general_dilated(
            x, w, window_strides=(stride, stride), padding="VALID",
            dimension_numbers=("NCHW", "OIHW", "NCHW"))
        y = y + b[None, :, None, None]
        y = (y - rm[None, :, None, None]) / jnp.sqrt(rv + eps)[None, :, None, None]
        y = gamma[None, :, None, None] * y + beta[None, :, None, None]
        x = jnp.where(y > 0, y, LEAKY_SLOPE * y)
    x = jnp.maximum(x.reshape(x.shape[0], -1), 0.0)
    n_mlp = len(params["mlp"])
    for i, (w, b) in enumerate(params["mlp"]):
        x = x @ w + b
        if i < n_mlp - 1:
            x = jnp.maximum(x, 0.0)
    if softmax == "softmax":
        x = jax.nn.softmax(x, axis=-1)
    elif softmax == "log_softmax":
        x = jax.nn.log_softmax(x, axis=-1)
    return x


# ---------------------------------------------------------------------------
if __name__ == "__main__":
    # Config consistent with the module: hidden_channels=[4, 8], image_size=18,
    # kernel=stride=3, padding=0 -> spatial 18 -> 6 -> 2 ; mlp input_dim = 8*2*2 = 32
    batch = 2
    input_channels = 3
    image_size = 18
    hidden_channels = [4, 8]
    kernel_size = 3
    stride = 3
    padding = 0
    mlp_hidden_dims = [16]
    mlp_output_dim = 10

    # The fused kernel relies on the module's patchify configuration.
    assert stride == kernel_size and padding == 0

    last_dim = image_size
    for _ in hidden_channels:
        last_dim = calc_conv_output_size(last_dim, kernel_size, stride, padding)
    mlp_input_dim = hidden_channels[-1] * last_dim ** 2

    key = jax.random.PRNGKey(0)
    key, xkey = jax.random.split(key)
    x = jax.random.normal(xkey, (batch, input_channels, image_size, image_size),
                          jnp.float32)

    params = init_params(key, input_channels, hidden_channels, kernel_size,
                         mlp_input_dim, mlp_hidden_dims, mlp_output_dim)

    plan = prepare_fused_cnn(params, kernel_size=kernel_size,
                             image_size=image_size,
                             cnn_softmax_function="softmax")

    fwd = jax.jit(functools.partial(cnn_forward, plan))
    out = jax.block_until_ready(fwd(x))

    assert out.shape == (batch, mlp_output_dim), out.shape
    # softmax rows sum to 1 (exact divide kept in-kernel)
    assert jnp.allclose(jnp.sum(out, axis=1), 1.0, atol=1e-5)

    # compare against a pure-JAX/XLA reference (bf16 MXU operands, f32 accumulation)
    ref = _reference_forward(params, x, stride=stride, softmax="softmax")
    max_err = float(jnp.max(jnp.abs(out - ref)))
    assert max_err < 2e-2, max_err

    print("KERNEL_OK")
</pallas_src>

<mosaic_0001>
module attributes {stable_mosaic.version = 11 : i64} {
  func.func @kernel(%arg0: i32, %arg1: memref<1x288x128xbf16, #tpu.memory_space<vmem>>, %arg2: memref<128x128xbf16, #tpu.memory_space<vmem>>, %arg3: memref<1x128xf32, #tpu.memory_space<vmem>>, %arg4: memref<1x128xf32, #tpu.memory_space<vmem>>, %arg5: memref<9x128x128xbf16, #tpu.memory_space<vmem>>, %arg6: memref<1x128xf32, #tpu.memory_space<vmem>>, %arg7: memref<1x128xf32, #tpu.memory_space<vmem>>, %arg8: memref<4x128x128xbf16, #tpu.memory_space<vmem>>, %arg9: memref<1x128xf32, #tpu.memory_space<vmem>>, %arg10: memref<128x128xbf16, #tpu.memory_space<vmem>>, %arg11: memref<1x128xf32, #tpu.memory_space<vmem>>, %arg12: memref<1x8x128xf32, #tpu.memory_space<vmem>>) attributes {dimension_semantics = [#tpu.dimension_semantics<parallel>], iteration_bounds = array<i64: 1>, scalar_prefetch = 0 : i64, scratch_operands = 0 : i64, tpu.core_type = #tpu.core_type<tc>, window_params = [{transform_indices = @transform_0, window_bounds = array<i64: 1, 288, 128>}, {pipeline_mode = #tpu.pipeline_mode<synchronous>, transform_indices = @transform_1, window_bounds = array<i64: 128, 128>}, {pipeline_mode = #tpu.pipeline_mode<synchronous>, transform_indices = @transform_2, window_bounds = array<i64: 1, 128>}, {pipeline_mode = #tpu.pipeline_mode<synchronous>, transform_indices = @transform_3, window_bounds = array<i64: 1, 128>}, {pipeline_mode = #tpu.pipeline_mode<synchronous>, transform_indices = @transform_4, window_bounds = array<i64: 9, 128, 128>}, {pipeline_mode = #tpu.pipeline_mode<synchronous>, transform_indices = @transform_5, window_bounds = array<i64: 1, 128>}, {pipeline_mode = #tpu.pipeline_mode<synchronous>, transform_indices = @transform_6, window_bounds = array<i64: 1, 128>}, {pipeline_mode = #tpu.pipeline_mode<synchronous>, transform_indices = @transform_7, window_bounds = array<i64: 4, 128, 128>}, {pipeline_mode = #tpu.pipeline_mode<synchronous>, transform_indices = @transform_8, window_bounds = array<i64: 1, 128>}, {pipeline_mode = #tpu.pipeline_mode<synchronous>, transform_indices = @transform_9, window_bounds = array<i64: 128, 128>}, {pipeline_mode = #tpu.pipeline_mode<synchronous>, transform_indices = @transform_10, window_bounds = array<i64: 1, 128>}, {transform_indices = @transform_11, window_bounds = array<i64: 1, 8, 128>}]} {
    %c0 = arith.constant 0 : index
    %c0_0 = arith.constant 0 : index
    %c0_1 = arith.constant 0 : index
    %0 = vector.load %arg1[%c0, %c0_0, %c0_1] : memref<1x288x128xbf16, #tpu.memory_space<vmem>>, vector<1x288x128xbf16>
    %1 = vector.shape_cast %0 : vector<1x288x128xbf16> to vector<288x128xbf16>
    %c0_2 = arith.constant 0 : index
    %c0_3 = arith.constant 0 : index
    %2 = vector.load %arg2[%c0_2, %c0_3] : memref<128x128xbf16, #tpu.memory_space<vmem>>, vector<128x128xbf16>
    %cst = arith.constant dense<0.000000e+00> : vector<288x128xf32>
    %3 = tpu.matmul %1, %2, %cst {dimension_numbers = #tpu.dot_dimension_numbers<[1], [0], [0], [1], [0, 0, 1, 1], [], []>} : vector<288x128xbf16>, vector<128x128xbf16>, vector<288x128xf32> -> vector<288x128xf32>
    %c0_4 = arith.constant 0 : index
    %c0_5 = arith.constant 0 : index
    %4 = vector.load %arg3[%c0_4, %c0_5] : memref<1x128xf32, #tpu.memory_space<vmem>>, vector<1x128xf32>
    %5 = vector.broadcast %4 : vector<1x128xf32> to vector<288x128xf32>
    %6 = arith.mulf %3, %5 : vector<288x128xf32>
    %c0_6 = arith.constant 0 : index
    %c0_7 = arith.constant 0 : index
    %7 = vector.load %arg4[%c0_6, %c0_7] : memref<1x128xf32, #tpu.memory_space<vmem>>, vector<1x128xf32>
    %8 = vector.broadcast %7 : vector<1x128xf32> to vector<288x128xf32>
    %9 = arith.addf %6, %8 : vector<288x128xf32>
    %cst_8 = arith.constant 0.000000e+00 : f32
    %10 = vector.broadcast %cst_8 : f32 to vector<288x128xf32>
    %11 = arith.cmpf ogt, %9, %10 : vector<288x128xf32>
    %cst_9 = arith.constant 0.00999999977 : f32
    %12 = vector.broadcast %cst_9 : f32 to vector<288x128xf32>
    %13 = arith.mulf %12, %9 : vector<288x128xf32>
    %14 = arith.select %11, %9, %13 : vector<288x128xi1>, vector<288x128xf32>
    %15 = arith.truncf %14 : vector<288x128xf32> to vector<288x128xbf16>
    %16 = vector.extract_strided_slice %15 {offsets = [0, 0], sizes = [32, 128], strides = [1, 1]} : vector<288x128xbf16> to vector<32x128xbf16>
    %c0_10 = arith.constant 0 : index
    %c0_11 = arith.constant 0 : index
    %c0_12 = arith.constant 0 : index
    %17 = vector.load %arg5[%c0_10, %c0_11, %c0_12] : memref<9x128x128xbf16, #tpu.memory_space<vmem>>, vector<1x128x128xbf16>
    %18 = vector.shape_cast %17 : vector<1x128x128xbf16> to vector<128x128xbf16>
    %cst_13 = arith.constant dense<0.000000e+00> : vector<32x128xf32>
    %19 = tpu.matmul %16, %18, %cst_13 {dimension_numbers = #tpu.dot_dimension_numbers<[1], [0], [0], [1], [0, 0, 1, 1], [], []>} : vector<32x128xbf16>, vector<128x128xbf16>, vector<32x128xf32> -> vector<32x128xf32>
    %20 = vector.extract_strided_slice %15 {offsets = [32, 0], sizes = [32, 128], strides = [1, 1]} : vector<288x128xbf16> to vector<32x128xbf16>
    %c1 = arith.constant 1 : index
    %c0_14 = arith.constant 0 : index
    %c0_15 = arith.constant 0 : index
    %21 = vector.load %arg5[%c1, %c0_14, %c0_15] : memref<9x128x128xbf16, #tpu.memory_space<vmem>>, vector<1x128x128xbf16>
    %22 = vector.shape_cast %21 : vector<1x128x128xbf16> to vector<128x128xbf16>
    %cst_16 = arith.constant dense<0.000000e+00> : vector<32x128xf32>
    %23 = tpu.matmul %20, %22, %cst_16 {dimension_numbers = #tpu.dot_dimension_numbers<[1], [0], [0], [1], [0, 0, 1, 1], [], []>} : vector<32x128xbf16>, vector<128x128xbf16>, vector<32x128xf32> -> vector<32x128xf32>
    %24 = arith.addf %19, %23 : vector<32x128xf32>
    %25 = vector.extract_strided_slice %15 {offsets = [64, 0], sizes = [32, 128], strides = [1, 1]} : vector<288x128xbf16> to vector<32x128xbf16>
    %c2 = arith.constant 2 : index
    %c0_17 = arith.constant 0 : index
    %c0_18 = arith.constant 0 : index
    %26 = vector.load %arg5[%c2, %c0_17, %c0_18] : memref<9x128x128xbf16, #tpu.memory_space<vmem>>, vector<1x128x128xbf16>
    %27 = vector.shape_cast %26 : vector<1x128x128xbf16> to vector<128x128xbf16>
    %cst_19 = arith.constant dense<0.000000e+00> : vector<32x128xf32>
    %28 = tpu.matmul %25, %27, %cst_19 {dimension_numbers = #tpu.dot_dimension_numbers<[1], [0], [0], [1], [0, 0, 1, 1], [], []>} : vector<32x128xbf16>, vector<128x128xbf16>, vector<32x128xf32> -> vector<32x128xf32>
    %29 = arith.addf %24, %28 : vector<32x128xf32>
    %30 = vector.extract_strided_slice %15 {offsets = [96, 0], sizes = [32, 128], strides = [1, 1]} : vector<288x128xbf16> to vector<32x128xbf16>
    %c3 = arith.constant 3 : index
    %c0_20 = arith.constant 0 : index
    %c0_21 = arith.constant 0 : index
    %31 = vector.load %arg5[%c3, %c0_20, %c0_21] : memref<9x128x128xbf16, #tpu.memory_space<vmem>>, vector<1x128x128xbf16>
    %32 = vector.shape_cast %31 : vector<1x128x128xbf16> to vector<128x128xbf16>
    %cst_22 = arith.constant dense<0.000000e+00> : vector<32x128xf32>
    %33 = tpu.matmul %30, %32, %cst_22 {dimension_numbers = #tpu.dot_dimension_numbers<[1], [0], [0], [1], [0, 0, 1, 1], [], []>} : vector<32x128xbf16>, vector<128x128xbf16>, vector<32x128xf32> -> vector<32x128xf32>
    %34 = arith.addf %29, %33 : vector<32x128xf32>
    %35 = vector.extract_strided_slice %15 {offsets = [128, 0], sizes = [32, 128], strides = [1, 1]} : vector<288x128xbf16> to vector<32x128xbf16>
    %c4 = arith.constant 4 : index
    %c0_23 = arith.constant 0 : index
    %c0_24 = arith.constant 0 : index
    %36 = vector.load %arg5[%c4, %c0_23, %c0_24] : memref<9x128x128xbf16, #tpu.memory_space<vmem>>, vector<1x128x128xbf16>
    %37 = vector.shape_cast %36 : vector<1x128x128xbf16> to vector<128x128xbf16>
    %cst_25 = arith.constant dense<0.000000e+00> : vector<32x128xf32>
    %38 = tpu.matmul %35, %37, %cst_25 {dimension_numbers = #tpu.dot_dimension_numbers<[1], [0], [0], [1], [0, 0, 1, 1], [], []>} : vector<32x128xbf16>, vector<128x128xbf16>, vector<32x128xf32> -> vector<32x128xf32>
    %39 = arith.addf %34, %38 : vector<32x128xf32>
    %40 = vector.extract_strided_slice %15 {offsets = [160, 0], sizes = [32, 128], strides = [1, 1]} : vector<288x128xbf16> to vector<32x128xbf16>
    %c5 = arith.constant 5 : index
    %c0_26 = arith.constant 0 : index
    %c0_27 = arith.constant 0 : index
    %41 = vector.load %arg5[%c5, %c0_26, %c0_27] : memref<9x128x128xbf16, #tpu.memory_space<vmem>>, vector<1x128x128xbf16>
    %42 = vector.shape_cast %41 : vector<1x128x128xbf16> to vector<128x128xbf16>
    %cst_28 = arith.constant dense<0.000000e+00> : vector<32x128xf32>
    %43 = tpu.matmul %40, %42, %cst_28 {dimension_numbers = #tpu.dot_dimension_numbers<[1], [0], [0], [1], [0, 0, 1, 1], [], []>} : vector<32x128xbf16>, vector<128x128xbf16>, vector<32x128xf32> -> vector<32x128xf32>
    %44 = arith.addf %39, %43 : vector<32x128xf32>
    %45 = vector.extract_strided_slice %15 {offsets = [192, 0], sizes = [32, 128], strides = [1, 1]} : vector<288x128xbf16> to vector<32x128xbf16>
    %c6 = arith.constant 6 : index
    %c0_29 = arith.constant 0 : index
    %c0_30 = arith.constant 0 : index
    %46 = vector.load %arg5[%c6, %c0_29, %c0_30] : memref<9x128x128xbf16, #tpu.memory_space<vmem>>, vector<1x128x128xbf16>
    %47 = vector.shape_cast %46 : vector<1x128x128xbf16> to vector<128x128xbf16>
    %cst_31 = arith.constant dense<0.000000e+00> : vector<32x128xf32>
    %48 = tpu.matmul %45, %47, %cst_31 {dimension_numbers = #tpu.dot_dimension_numbers<[1], [0], [0], [1], [0, 0, 1, 1], [], []>} : vector<32x128xbf16>, vector<128x128xbf16>, vector<32x128xf32> -> vector<32x128xf32>
    %49 = arith.addf %44, %48 : vector<32x128xf32>
    %50 = vector.extract_strided_slice %15 {offsets = [224, 0], sizes = [32, 128], strides = [1, 1]} : vector<288x128xbf16> to vector<32x128xbf16>
    %c7 = arith.constant 7 : index
    %c0_32 = arith.constant 0 : index
    %c0_33 = arith.constant 0 : index
    %51 = vector.load %arg5[%c7, %c0_32, %c0_33] : memref<9x128x128xbf16, #tpu.memory_space<vmem>>, vector<1x128x128xbf16>
    %52 = vector.shape_cast %51 : vector<1x128x128xbf16> to vector<128x128xbf16>
    %cst_34 = arith.constant dense<0.000000e+00> : vector<32x128xf32>
    %53 = tpu.matmul %50, %52, %cst_34 {dimension_numbers = #tpu.dot_dimension_numbers<[1], [0], [0], [1], [0, 0, 1, 1], [], []>} : vector<32x128xbf16>, vector<128x128xbf16>, vector<32x128xf32> -> vector<32x128xf32>
    %54 = arith.addf %49, %53 : vector<32x128xf32>
    %55 = vector.extract_strided_slice %15 {offsets = [256, 0], sizes = [32, 128], strides = [1, 1]} : vector<288x128xbf16> to vector<32x128xbf16>
    %c8 = arith.constant 8 : index
    %c0_35 = arith.constant 0 : index
    %c0_36 = arith.constant 0 : index
    %56 = vector.load %arg5[%c8, %c0_35, %c0_36] : memref<9x128x128xbf16, #tpu.memory_space<vmem>>, vector<1x128x128xbf16>
    %57 = vector.shape_cast %56 : vector<1x128x128xbf16> to vector<128x128xbf16>
    %cst_37 = arith.constant dense<0.000000e+00> : vector<32x128xf32>
    %58 = tpu.matmul %55, %57, %cst_37 {dimension_numbers = #tpu.dot_dimension_numbers<[1], [0], [0], [1], [0, 0, 1, 1], [], []>} : vector<32x128xbf16>, vector<128x128xbf16>, vector<32x128xf32> -> vector<32x128xf32>
    %59 = arith.addf %54, %58 : vector<32x128xf32>
    %c0_38 = arith.constant 0 : index
    %c0_39 = arith.constant 0 : index
    %60 = vector.load %arg6[%c0_38, %c0_39] : memref<1x128xf32, #tpu.memory_space<vmem>>, vector<1x128xf32>
    %61 = vector.broadcast %60 : vector<1x128xf32> to vector<32x128xf32>
    %62 = arith.mulf %59, %61 : vector<32x128xf32>
    %c0_40 = arith.constant 0 : index
    %c0_41 = arith.constant 0 : index
    %63 = vector.load %arg7[%c0_40, %c0_41] : memref<1x128xf32, #tpu.memory_space<vmem>>, vector<1x128xf32>
    %64 = vector.broadcast %63 : vector<1x128xf32> to vector<32x128xf32>
    %65 = arith.addf %62, %64 : vector<32x128xf32>
    %cst_42 = arith.constant 0.000000e+00 : f32
    %66 = vector.broadcast %cst_42 : f32 to vector<32x128xf32>
    %67 = arith.cmpf ogt, %65, %66 : vector<32x128xf32>
    %cst_43 = arith.constant 0.00999999977 : f32
    %68 = vector.broadcast %cst_43 : f32 to vector<32x128xf32>
    %69 = arith.mulf %68, %65 : vector<32x128xf32>
    %70 = arith.select %67, %65, %69 : vector<32x128xi1>, vector<32x128xf32>
    %cst_44 = arith.constant 0.000000e+00 : f32
    %71 = vector.broadcast %cst_44 : f32 to vector<32x128xf32>
    %72 = arith.maximumf %70, %71 : vector<32x128xf32>
    %73 = arith.truncf %72 : vector<32x128xf32> to vector<32x128xbf16>
    %74 = vector.extract_strided_slice %73 {offsets = [0, 0], sizes = [8, 128], strides = [1, 1]} : vector<32x128xbf16> to vector<8x128xbf16>
    %c0_45 = arith.constant 0 : index
    %c0_46 = arith.constant 0 : index
    %c0_47 = arith.constant 0 : index
    %75 = vector.load %arg8[%c0_45, %c0_46, %c0_47] : memref<4x128x128xbf16, #tpu.memory_space<vmem>>, vector<1x128x128xbf16>
    %76 = vector.shape_cast %75 : vector<1x128x128xbf16> to vector<128x128xbf16>
    %cst_48 = arith.constant dense<0.000000e+00> : vector<8x128xf32>
    %77 = tpu.matmul %74, %76, %cst_48 {dimension_numbers = #tpu.dot_dimension_numbers<[1], [0], [0], [1], [0, 0, 1, 1], [], []>} : vector<8x128xbf16>, vector<128x128xbf16>, vector<8x128xf32> -> vector<8x128xf32>
    %78 = vector.extract_strided_slice %73 {offsets = [8, 0], sizes = [8, 128], strides = [1, 1]} : vector<32x128xbf16> to vector<8x128xbf16>
    %c1_49 = arith.constant 1 : index
    %c0_50 = arith.constant 0 : index
    %c0_51 = arith.constant 0 : index
    %79 = vector.load %arg8[%c1_49, %c0_50, %c0_51] : memref<4x128x128xbf16, #tpu.memory_space<vmem>>, vector<1x128x128xbf16>
    %80 = vector.shape_cast %79 : vector<1x128x128xbf16> to vector<128x128xbf16>
    %cst_52 = arith.constant dense<0.000000e+00> : vector<8x128xf32>
    %81 = tpu.matmul %78, %80, %cst_52 {dimension_numbers = #tpu.dot_dimension_numbers<[1], [0], [0], [1], [0, 0, 1, 1], [], []>} : vector<8x128xbf16>, vector<128x128xbf16>, vector<8x128xf32> -> vector<8x128xf32>
    %82 = arith.addf %77, %81 : vector<8x128xf32>
    %83 = vector.extract_strided_slice %73 {offsets = [16, 0], sizes = [8, 128], strides = [1, 1]} : vector<32x128xbf16> to vector<8x128xbf16>
    %c2_53 = arith.constant 2 : index
    %c0_54 = arith.constant 0 : index
    %c0_55 = arith.constant 0 : index
    %84 = vector.load %arg8[%c2_53, %c0_54, %c0_55] : memref<4x128x128xbf16, #tpu.memory_space<vmem>>, vector<1x128x128xbf16>
    %85 = vector.shape_cast %84 : vector<1x128x128xbf16> to vector<128x128xbf16>
    %cst_56 = arith.constant dense<0.000000e+00> : vector<8x128xf32>
    %86 = tpu.matmul %83, %85, %cst_56 {dimension_numbers = #tpu.dot_dimension_numbers<[1], [0], [0], [1], [0, 0, 1, 1], [], []>} : vector<8x128xbf16>, vector<128x128xbf16>, vector<8x128xf32> -> vector<8x128xf32>
    %87 = arith.addf %82, %86 : vector<8x128xf32>
    %88 = vector.extract_strided_slice %73 {offsets = [24, 0], sizes = [8, 128], strides = [1, 1]} : vector<32x128xbf16> to vector<8x128xbf16>
    %c3_57 = arith.constant 3 : index
    %c0_58 = arith.constant 0 : index
    %c0_59 = arith.constant 0 : index
    %89 = vector.load %arg8[%c3_57, %c0_58, %c0_59] : memref<4x128x128xbf16, #tpu.memory_space<vmem>>, vector<1x128x128xbf16>
    %90 = vector.shape_cast %89 : vector<1x128x128xbf16> to vector<128x128xbf16>
    %cst_60 = arith.constant dense<0.000000e+00> : vector<8x128xf32>
    %91 = tpu.matmul %88, %90, %cst_60 {dimension_numbers = #tpu.dot_dimension_numbers<[1], [0], [0], [1], [0, 0, 1, 1], [], []>} : vector<8x128xbf16>, vector<128x128xbf16>, vector<8x128xf32> -> vector<8x128xf32>
    %92 = arith.addf %87, %91 : vector<8x128xf32>
    %c0_61 = arith.constant 0 : index
    %c0_62 = arith.constant 0 : index
    %93 = vector.load %arg9[%c0_61, %c0_62] : memref<1x128xf32, #tpu.memory_space<vmem>>, vector<1x128xf32>
    %94 = vector.broadcast %93 : vector<1x128xf32> to vector<8x128xf32>
    %95 = arith.addf %92, %94 : vector<8x128xf32>
    %cst_63 = arith.constant 0.000000e+00 : f32
    %96 = vector.broadcast %cst_63 : f32 to vector<8x128xf32>
    %97 = arith.maximumf %95, %96 : vector<8x128xf32>
    %98 = arith.truncf %97 : vector<8x128xf32> to vector<8x128xbf16>
    %c0_64 = arith.constant 0 : index
    %c0_65 = arith.constant 0 : index
    %99 = vector.load %arg10[%c0_64, %c0_65] : memref<128x128xbf16, #tpu.memory_space<vmem>>, vector<128x128xbf16>
    %cst_66 = arith.constant dense<0.000000e+00> : vector<8x128xf32>
    %100 = tpu.matmul %98, %99, %cst_66 {dimension_numbers = #tpu.dot_dimension_numbers<[1], [0], [0], [1], [0, 0, 1, 1], [], []>} : vector<8x128xbf16>, vector<128x128xbf16>, vector<8x128xf32> -> vector<8x128xf32>
    %c0_67 = arith.constant 0 : index
    %c0_68 = arith.constant 0 : index
    %101 = vector.load %arg11[%c0_67, %c0_68] : memref<1x128xf32, #tpu.memory_space<vmem>>, vector<1x128xf32>
    %102 = vector.broadcast %101 : vector<1x128xf32> to vector<8x128xf32>
    %103 = arith.addf %100, %102 : vector<8x128xf32>
    %cst_69 = arith.constant dense<0xFF800000> : vector<8xf32>
    %104 = vector.multi_reduction <maximumf>, %103, %cst_69 [1] : vector<8x128xf32> to vector<8xf32>
    %105 = vector.shape_cast %104 : vector<8xf32> to vector<8x1xf32>
    %106 = vector.broadcast %105 : vector<8x1xf32> to vector<8x128xf32>
    %107 = arith.subf %103, %106 : vector<8x128xf32>
    %108 = math.exp %107 : vector<8x128xf32>
    %cst_70 = arith.constant dense<0.000000e+00> : vector<8xf32>
    %109 = vector.multi_reduction <add>, %108, %cst_70 [1] : vector<8x128xf32> to vector<8xf32>
    %110 = vector.shape_cast %109 : vector<8xf32> to vector<8x1xf32>
    %111 = vector.broadcast %110 : vector<8x1xf32> to vector<8x128xf32>
    %112 = arith.divf %108, %111 : vector<8x128xf32>
    %c0_71 = arith.constant 0 : index
    %c0_72 = arith.constant 0 : index
    %c0_73 = arith.constant 0 : index
    %113 = vector.load %arg12[%c0_71, %c0_72, %c0_73] : memref<1x8x128xf32, #tpu.memory_space<vmem>>, vector<1x8x128xf32>
    %114 = vector.shape_cast %113 : vector<1x8x128xf32> to vector<8x128xf32>
    %115 = vector.shape_cast %112 : vector<8x128xf32> to vector<1x8x128xf32>
    tpu.vector_store %arg12[%c0_71, %c0_72, %c0_73], %115 {strides = array<i32>} : memref<1x8x128xf32, #tpu.memory_space<vmem>>, vector<1x8x128xf32>,
    return
  }
  func.func @transform_0(%arg0: i32) -> (i32, i32, i32) {
    %c0_i32 = arith.constant 0 : i32
    %c0_i32_0 = arith.constant 0 : i32
    %c0_i32_1 = arith.constant 0 : i32
    return %arg0, %c0_i32, %c0_i32_0 : i32, i32, i32
  }
  func.func @transform_1(%arg0: i32) -> (i32, i32) {
    %c0_i32 = arith.constant 0 : i32
    %c0_i32_0 = arith.constant 0 : i32
    %c0_i32_1 = arith.constant 0 : i32
    return %c0_i32, %c0_i32_0 : i32, i32
  }
  func.func @transform_2(%arg0: i32) -> (i32, i32) {
    %c0_i32 = arith.constant 0 : i32
    %c0_i32_0 = arith.constant 0 : i32
    %c0_i32_1 = arith.constant 0 : i32
    return %c0_i32, %c0_i32_0 : i32, i32
  }
  func.func @transform_3(%arg0: i32) -> (i32, i32) {
    %c0_i32 = arith.constant 0 : i32
    %c0_i32_0 = arith.constant 0 : i32
    %c0_i32_1 = arith.constant 0 : i32
    return %c0_i32, %c0_i32_0 : i32, i32
  }
  func.func @transform_4(%arg0: i32) -> (i32, i32, i32) {
    %c0_i32 = arith.constant 0 : i32
    %c0_i32_0 = arith.constant 0 : i32
    %c0_i32_1 = arith.constant 0 : i32
    %c0_i32_2 = arith.constant 0 : i32
    return %c0_i32, %c0_i32_0, %c0_i32_1 : i32, i32, i32
  }
  func.func @transform_5(%arg0: i32) -> (i32, i32) {
    %c0_i32 = arith.constant 0 : i32
    %c0_i32_0 = arith.constant 0 : i32
    %c0_i32_1 = arith.constant 0 : i32
    return %c0_i32, %c0_i32_0 : i32, i32
  }
  func.func @transform_6(%arg0: i32) -> (i32, i32) {
    %c0_i32 = arith.constant 0 : i32
    %c0_i32_0 = arith.constant 0 : i32
    %c0_i32_1 = arith.constant 0 : i32
    return %c0_i32, %c0_i32_0 : i32, i32
  }
  func.func @transform_7(%arg0: i32) -> (i32, i32, i32) {
    %c0_i32 = arith.constant 0 : i32
    %c0_i32_0 = arith.constant 0 : i32
    %c0_i32_1 = arith.constant 0 : i32
    %c0_i32_2 = arith.constant 0 : i32
    return %c0_i32, %c0_i32_0, %c0_i32_1 : i32, i32, i32
  }
  func.func @transform_8(%arg0: i32) -> (i32, i32) {
    %c0_i32 = arith.constant 0 : i32
    %c0_i32_0 = arith.constant 0 : i32
    %c0_i32_1 = arith.constant 0 : i32
    return %c0_i32, %c0_i32_0 : i32, i32
  }
  func.func @transform_9(%arg0: i32) -> (i32, i32) {
    %c0_i32 = arith.constant 0 : i32
    %c0_i32_0 = arith.constant 0 : i32
    %c0_i32_1 = arith.constant 0 : i32
    return %c0_i32, %c0_i32_0 : i32, i32
  }
  func.func @transform_10(%arg0: i32) -> (i32, i32) {
    %c0_i32 = arith.constant 0 : i32
    %c0_i32_0 = arith.constant 0 : i32
    %c0_i32_1 = arith.constant 0 : i32
    return %c0_i32, %c0_i32_0 : i32, i32
  }
  func.func @transform_11(%arg0: i32) -> (i32, i32, i32) {
    %c0_i32 = arith.constant 0 : i32
    %c0_i32_0 = arith.constant 0 : i32
    %c0_i32_1 = arith.constant 0 : i32
    return %arg0, %c0_i32, %c0_i32_0 : i32, i32, i32
  }
}

</mosaic_0001>

<llo_original>
// kernel: cnn_forward.1
$region0: #{cnn_forward.1}
  #allocation0 [shape = 'u32[]', space=smem, size = 0x4, offset = 0x4, fixed_abs, tag = 'smem constant byte address 0x4 - core index']
  #allocation1 [shape = 'u32[144,128]{1,0:T(1,128)}', space=vmem, size = 0x12000, scoped, tag = 'internal scratch']
  %s0 = inlined_call_operand.vmem [shape: bf16[1,288,128], index: 0, kind: input, shape index: {}]
  %s1 = inlined_call_operand.vmem [shape: bf16[128,128], index: 1, kind: input, shape index: {}]
  %s2 = inlined_call_operand.vmem [shape: f32[1,128], index: 2, kind: input, shape index: {}]
  %s3 = inlined_call_operand.vmem [shape: f32[1,128], index: 3, kind: input, shape index: {}]
  %s4 = inlined_call_operand.vmem [shape: bf16[9,128,128], index: 4, kind: input, shape index: {}]
  %s5 = inlined_call_operand.vmem [shape: f32[1,128], index: 5, kind: input, shape index: {}]
  %s6 = inlined_call_operand.vmem [shape: f32[1,128], index: 6, kind: input, shape index: {}]
  %s7 = inlined_call_operand.vmem [shape: bf16[4,128,128], index: 7, kind: input, shape index: {}]
  %s8 = inlined_call_operand.vmem [shape: f32[1,128], index: 8, kind: input, shape index: {}]
  %s9 = inlined_call_operand.vmem [shape: bf16[128,128], index: 9, kind: input, shape index: {}]
  %s10 = inlined_call_operand.vmem [shape: f32[1,128], index: 10, kind: input, shape index: {}]
  %s11 = inlined_call_operand.vmem [shape: f32[1,8,128], index: 11, kind: output, shape index: {}]
  %s12 = sld [smem:[#allocation0]]
  $region54: #{cnn_forward.1} parent=0
    _
  %s14 = ssub.s32 1, %s12
  %s15 = scalar_select 0, %s14, %s12
  // Predicated region
  $region2: #{cnn_forward.1} parent=0 // pred_check
    _
  $region3: #{cnn_forward.1} parent=0 // pred_check_branch
    %17 = sbr.rel (0) target = $region5
  $region4: #{cnn_forward.1} parent=0 // pred_region
    _
  $region5: #{cnn_forward.1} parent=0 // pred_fallthru
    _
  // Predicated region
  $region6: #{cnn_forward.1} parent=0 // pred_check
    _
  $region7: #{cnn_forward.1} parent=0 // pred_check_branch
    %19 = sbr.rel (0) target = $region9
  $region8: #{cnn_forward.1} parent=0 // pred_region
    _
  $region9: #{cnn_forward.1} parent=0 // pred_fallthru
    _
  // Predicated region
  $region10: #{cnn_forward.1} parent=0 // pred_check
    _
  $region11: #{cnn_forward.1} parent=0 // pred_check_branch
    %21 = sbr.rel (0) target = $region13
  $region12: #{cnn_forward.1} parent=0 // pred_region
    _
  $region13: #{cnn_forward.1} parent=0 // pred_fallthru
    _
  // Predicated region
  $region14: #{cnn_forward.1} parent=0 // pred_check
    _
  $region15: #{cnn_forward.1} parent=0 // pred_check_branch
    %23 = sbr.rel (0) target = $region17
  $region16: #{cnn_forward.1} parent=0 // pred_region
    _
  $region17: #{cnn_forward.1} parent=0 // pred_fallthru
    _
  // Predicated region
  $region18: #{cnn_forward.1} parent=0 // pred_check
    _
  $region19: #{cnn_forward.1} parent=0 // pred_check_branch
    %25 = sbr.rel (0) target = $region21
  $region20: #{cnn_forward.1} parent=0 // pred_region
    _
  $region21: #{cnn_forward.1} parent=0 // pred_fallthru
    _
  // Predicated region
  $region22: #{cnn_forward.1} parent=0 // pred_check
    _
  $region23: #{cnn_forward.1} parent=0 // pred_check_branch
    %27 = sbr.rel (0) target = $region25
  $region24: #{cnn_forward.1} parent=0 // pred_region
    _
  $region25: #{cnn_forward.1} parent=0 // pred_fallthru
    _
  // Predicated region
  $region26: #{cnn_forward.1} parent=0 // pred_check
    _
  $region27: #{cnn_forward.1} parent=0 // pred_check_branch
    %29 = sbr.rel (0) target = $region29
  $region28: #{cnn_forward.1} parent=0 // pred_region
    _
  $region29: #{cnn_forward.1} parent=0 // pred_fallthru
    _
  // Predicated region
  $region30: #{cnn_forward.1} parent=0 // pred_check
    _
  $region31: #{cnn_forward.1} parent=0 // pred_check_branch
    %31 = sbr.rel (0) target = $region33
  $region32: #{cnn_forward.1} parent=0 // pred_region
    _
  $region33: #{cnn_forward.1} parent=0 // pred_fallthru
    _
  // Predicated region
  $region34: #{cnn_forward.1} parent=0 // pred_check
    _
  $region35: #{cnn_forward.1} parent=0 // pred_check_branch
    %33 = sbr.rel (0) target = $region37
  $region36: #{cnn_forward.1} parent=0 // pred_region
    _
  $region37: #{cnn_forward.1} parent=0 // pred_fallthru
    _
  // Predicated region
  $region38: #{cnn_forward.1} parent=0 // pred_check
    _
  $region39: #{cnn_forward.1} parent=0 // pred_check_branch
    %35 = sbr.rel (0) target = $region41
  $region40: #{cnn_forward.1} parent=0 // pred_region
    _
  $region41: #{cnn_forward.1} parent=0 // pred_fallthru
    _
  // Predicated region
  $region42: #{cnn_forward.1} parent=0 // pred_check
    _
  $region43: #{cnn_forward.1} parent=0 // pred_check_branch
    %37 = sbr.rel (0) target = $region45
  $region44: #{cnn_forward.1} parent=0 // pred_region
    _
  $region45: #{cnn_forward.1} parent=0 // pred_fallthru
    _
  %v39 = vld [vmem:[%s0] sm:$0xf]
  %v40 = vld [vmem:[%s0 + $0x4] sm:$0xf]
  %v41 = vld [vmem:[%s0 + $0x8] sm:$0xf]
  %v42 = vld [vmem:[%s0 + $0xc] sm:$0xf]
  %v43 = vld [vmem:[%s0 + $0x10] sm:$0xf]
  %v44 = vld [vmem:[%s0 + $0x14] sm:$0xf]
  %v45 = vld [vmem:[%s0 + $0x18] sm:$0xf]
  %v46 = vld [vmem:[%s0 + $0x1c] sm:$0xf]
  %v47 = vld [vmem:[%s0 + $0x20] sm:$0xf]
  %v48 = vld [vmem:[%s0 + $0x24] sm:$0xf]
  %v49 = vld [vmem:[%s0 + $0x28] sm:$0xf]
  %v50 = vld [vmem:[%s0 + $0x2c] sm:$0xf]
  %v51 = vld [vmem:[%s0 + $0x30] sm:$0xf]
  %v52 = vld [vmem:[%s0 + $0x34] sm:$0xf]
  %v53 = vld [vmem:[%s0 + $0x38] sm:$0xf]
  %v54 = vld [vmem:[%s0 + $0x3c] sm:$0xf]
  %v55 = vld [vmem:[%s0 + $0x40] sm:$0xf]
  %v56 = vld [vmem:[%s0 + $0x44] sm:$0xf]
  %v57 = vld [vmem:[%s0 + $0x48] sm:$0xf]
  %v58 = vld [vmem:[%s0 + $0x4c] sm:$0xf]
  %v59 = vld [vmem:[%s0 + $0x50] sm:$0xf]
  %v60 = vld [vmem:[%s0 + $0x54] sm:$0xf]
  %v61 = vld [vmem:[%s0 + $0x58] sm:$0xf]
  %v62 = vld [vmem:[%s0 + $0x5c] sm:$0xf]
  %v63 = vld [vmem:[%s0 + $0x60] sm:$0xf]
  %v64 = vld [vmem:[%s0 + $0x64] sm:$0xf]
  %v65 = vld [vmem:[%s0 + $0x68] sm:$0xf]
  %v66 = vld [vmem:[%s0 + $0x6c] sm:$0xf]
  %v67 = vld [vmem:[%s0 + $0x70] sm:$0xf]
  %v68 = vld [vmem:[%s0 + $0x74] sm:$0xf]
  %v69 = vld [vmem:[%s0 + $0x78] sm:$0xf]
  %v70 = vld [vmem:[%s0 + $0x7c] sm:$0xf]
  %v71 = vld [vmem:[%s0 + $0x80] sm:$0xf]
  %v72 = vld [vmem:[%s0 + $0x84] sm:$0xf]
  %v73 = vld [vmem:[%s0 + $0x88] sm:$0xf]
  %v74 = vld [vmem:[%s0 + $0x8c] sm:$0xf]
  %v75 = vld [vmem:[%s1] sm:$0xf]
  %v76 = vld [vmem:[%s1 + $0x4] sm:$0xf]
  %v77 = vld [vmem:[%s1 + $0x8] sm:$0xf]
  %v78 = vld [vmem:[%s1 + $0xc] sm:$0xf]
  %v79 = vld [vmem:[%s1 + $0x10] sm:$0xf]
  %v80 = vld [vmem:[%s1 + $0x14] sm:$0xf]
  %v81 = vld [vmem:[%s1 + $0x18] sm:$0xf]
  %v82 = vld [vmem:[%s1 + $0x1c] sm:$0xf]
  %v83 = vld [vmem:[%s1 + $0x20] sm:$0xf]
  %v84 = vld [vmem:[%s1 + $0x24] sm:$0xf]
  %v85 = vld [vmem:[%s1 + $0x28] sm:$0xf]
  %v86 = vld [vmem:[%s1 + $0x2c] sm:$0xf]
  %v87 = vld [vmem:[%s1 + $0x30] sm:$0xf]
  %v88 = vld [vmem:[%s1 + $0x34] sm:$0xf]
  %v89 = vld [vmem:[%s1 + $0x38] sm:$0xf]
  %v90 = vld [vmem:[%s1 + $0x3c] sm:$0xf]
  %v127 = vunpack.c.l.b16 %v39
  %v128 = vunpack.c.l.b16 %v40
  %v129 = vunpack.c.l.b16 %v41
  %v130 = vunpack.c.l.b16 %v42
  %v131 = vunpack.c.l.b16 %v43
  %v132 = vunpack.c.l.b16 %v44
  %v133 = vunpack.c.l.b16 %v45
  %v134 = vunpack.c.l.b16 %v46
  %v135 = vunpack.c.l.b16 %v47
  %v136 = vunpack.c.l.b16 %v48
  %v137 = vunpack.c.l.b16 %v49
  %v138 = vunpack.c.l.b16 %v50
  %v139 = vunpack.c.l.b16 %v51
  %v140 = vunpack.c.l.b16 %v52
  %v141 = vunpack.c.l.b16 %v53
  %v142 = vunpack.c.l.b16 %v54
  %v143 = vunpack.c.l.b16 %v55
  %v144 = vunpack.c.l.b16 %v56
  %v145 = vunpack.c.l.b16 %v57
  %v146 = vunpack.c.l.b16 %v58
  %v147 = vunpack.c.l.b16 %v59
  %v148 = vunpack.c.l.b16 %v60
  %v149 = vunpack.c.l.b16 %v61
  %v150 = vunpack.c.l.b16 %v62
  %v151 = vunpack.c.l.b16 %v63
  %v152 = vunpack.c.l.b16 %v64
  %v153 = vunpack.c.l.b16 %v65
  %v154 = vunpack.c.l.b16 %v66
  %v155 = vunpack.c.l.b16 %v67
  %v156 = vunpack.c.l.b16 %v68
  %v157 = vunpack.c.l.b16 %v69
  %v158 = vunpack.c.l.b16 %v70
  %v159 = vunpack.c.l.b16 %v71
  %v160 = vunpack.c.l.b16 %v72
  %v161 = vunpack.c.l.b16 %v73
  %v162 = vunpack.c.l.b16 %v74
  %v163 = vpack.c.b16 %v128, %v127
  %v164 = vpack.c.b16 %v130, %v129
  %v165 = vpack.c.b16 %v132, %v131
  %v166 = vpack.c.b16 %v134, %v133
  %v167 = vpack.c.b16 %v136, %v135
  %v168 = vpack.c.b16 %v138, %v137
  %v169 = vpack.c.b16 %v140, %v139
  %v170 = vpack.c.b16 %v142, %v141
  %v171 = vpack.c.b16 %v144, %v143
  %v172 = vpack.c.b16 %v146, %v145
  %v173 = vpack.c.b16 %v148, %v147
  %v174 = vpack.c.b16 %v150, %v149
  %v175 = vpack.c.b16 %v152, %v151
  %v176 = vpack.c.b16 %v154, %v153
  %v177 = vpack.c.b16 %v156, %v155
  %v178 = vpack.c.b16 %v158, %v157
  %v179 = vpack.c.b16 %v160, %v159
  %v180 = vpack.c.b16 %v162, %v161
  %v215 = vunpack.c.l.b16 %v75
  %v216 = vunpack.c.l.b16 %v76
  %v217 = vunpack.c.l.b16 %v77
  %v218 = vunpack.c.l.b16 %v78
  %v219 = vunpack.c.l.b16 %v79
  %v220 = vunpack.c.l.b16 %v80
  %v221 = vunpack.c.l.b16 %v81
  %v222 = vunpack.c.l.b16 %v82
  %v223 = vunpack.c.l.b16 %v83
  %v224 = vunpack.c.l.b16 %v84
  %v225 = vunpack.c.l.b16 %v85
  %v226 = vunpack.c.l.b16 %v86
  %v227 = vunpack.c.l.b16 %v87
  %v228 = vunpack.c.l.b16 %v88
  %v229 = vunpack.c.l.b16 %v89
  %v230 = vunpack.c.l.b16 %v90
  %v231 = vpack.c.b16 %v216, %v215
  %v232 = vpack.c.b16 %v218, %v217
  %v233 = vpack.c.b16 %v220, %v219
  %v234 = vpack.c.b16 %v222, %v221
  %v235 = vpack.c.b16 %v224, %v223
  %v236 = vpack.c.b16 %v226, %v225
  %v237 = vpack.c.b16 %v228, %v227
  %v238 = vpack.c.b16 %v230, %v229
  %247 = vmatprep.subr.bf16.mxu0 0
  %248 = vmatpush1.bf16.msra.mxu0 %v238
  %249 = vmatprep.subr.bf16.mxu0 0
  %250 = vmatpush1.bf16.msra.mxu0 %v237
  %251 = vmatprep.subr.bf16.mxu0 0
  %252 = vmatpush1.bf16.msra.mxu0 %v236
  %253 = vmatprep.subr.bf16.mxu0 0
  %254 = vmatpush1.bf16.msra.mxu0 %v235
  %255 = vmatprep.subr.bf16.mxu0 0
  %256 = vmatpush1.bf16.msra.mxu0 %v234
  %257 = vmatprep.subr.bf16.mxu0 0
  %258 = vmatpush1.bf16.msra.mxu0 %v233
  %259 = vmatprep.subr.bf16.mxu0 0
  %260 = vmatpush1.bf16.msra.mxu0 %v232
  %261 = vmatprep.subr.bf16.mxu0 0
  %262 = vmatpush1.bf16.msra.mxu0 %v231
  %263 = vmatprep.subr.bf16.mxu0 0
  %264 = vmatpush2.bf16.msra.mxu0 0
  %265 = vmatprep.subr.bf16.mxu0 0
  %266 = vmatpush2.bf16.msra.mxu0 0
  %267 = vmatprep.subr.bf16.mxu0 0
  %268 = vmatpush2.bf16.msra.mxu0 0
  %269 = vmatprep.subr.bf16.mxu0 0
  %270 = vmatpush2.bf16.msra.mxu0 0
  %271 = vmatprep.subr.bf16.mxu0 0
  %272 = vmatpush2.bf16.msra.mxu0 0
  %273 = vmatprep.subr.bf16.mxu0 0
  %274 = vmatpush2.bf16.msra.mxu0 0
  %275 = vmatprep.subr.bf16.mxu0 0
  %276 = vmatpush2.bf16.msra.mxu0 0
  %277 = vmatprep.subr.bf16.mxu0 0
  %278 = vmatpush2.bf16.msra.mxu0 0
  %279 = vmatprep.mubr.bf16.mxu0 0
  %280 = vmatmul.mubr.bf16.gmra.mxu0 %v163
  %v281 = vpop.f32.mrf.mxu0
  %v282 = vadd.f32 0.0, %v281
  %v283 = vpop.f32.mrf.mxu0
  %v284 = vpop.f32.mrf.mxu0
  %v285 = vadd.f32 0.0, %v284
  %v286 = vpop.f32.mrf.mxu0
  %287 = vmatprep.mubr.bf16.mxu0 0
  %288 = vmatmul.mubr.bf16.gmra.mxu0 %v164
  %v289 = vpop.f32.mrf.mxu0
  %v290 = vadd.f32 0.0, %v289
  %v291 = vpop.f32.mrf.mxu0
  %v292 = vpop.f32.mrf.mxu0
  %v293 = vadd.f32 0.0, %v292
  %v294 = vpop.f32.mrf.mxu0
  %295 = vmatprep.mubr.bf16.mxu0 0
  %296 = vmatmul.mubr.bf16.gmra.mxu0 %v165
  %v297 = vpop.f32.mrf.mxu0
  %v298 = vadd.f32 0.0, %v297
  %v299 = vpop.f32.mrf.mxu0
  %v300 = vpop.f32.mrf.mxu0
  %v301 = vadd.f32 0.0, %v300
  %v302 = vpop.f32.mrf.mxu0
  %303 = vmatprep.mubr.bf16.mxu0 0
  %304 = vmatmul.mubr.bf16.gmra.mxu0 %v166
  %v305 = vpop.f32.mrf.mxu0
  %v306 = vadd.f32 0.0, %v305
  %v307 = vpop.f32.mrf.mxu0
  %v308 = vpop.f32.mrf.mxu0
  %v309 = vadd.f32 0.0, %v308
  %v310 = vpop.f32.mrf.mxu0
  %311 = vmatprep.mubr.bf16.mxu0 0
  %312 = vmatmul.mubr.bf16.gmra.mxu0 %v167
  %v313 = vpop.f32.mrf.mxu0
  %v314 = vadd.f32 0.0, %v313
  %v315 = vpop.f32.mrf.mxu0
  %v316 = vpop.f32.mrf.mxu0
  %v317 = vadd.f32 0.0, %v316
  %v318 = vpop.f32.mrf.mxu0
  %319 = vmatprep.mubr.bf16.mxu0 0
  %320 = vmatmul.mubr.bf16.gmra.mxu0 %v168
  %v321 = vpop.f32.mrf.mxu0
  %v322 = vadd.f32 0.0, %v321
  %v323 = vpop.f32.mrf.mxu0
  %v324 = vpop.f32.mrf.mxu0
  %v325 = vadd.f32 0.0, %v324
  %v326 = vpop.f32.mrf.mxu0
  %327 = vmatprep.mubr.bf16.mxu0 0
  %328 = vmatmul.mubr.bf16.gmra.mxu0 %v169
  %v329 = vpop.f32.mrf.mxu0
  %v330 = vadd.f32 0.0, %v329
  %v331 = vpop.f32.mrf.mxu0
  %v332 = vpop.f32.mrf.mxu0
  %v333 = vadd.f32 0.0, %v332
  %v334 = vpop.f32.mrf.mxu0
  %335 = vmatprep.mubr.bf16.mxu0 0
  %336 = vmatmul.mubr.bf16.gmra.mxu0 %v170
  %v337 = vpop.f32.mrf.mxu0
  %v338 = vadd.f32 0.0, %v337
  %v339 = vpop.f32.mrf.mxu0
  %v340 = vpop.f32.mrf.mxu0
  %v341 = vadd.f32 0.0, %v340
  %v342 = vpop.f32.mrf.mxu0
  %343 = vmatprep.mubr.bf16.mxu0 0
  %344 = vmatmul.mubr.bf16.gmra.mxu0 %v171
  %v345 = vpop.f32.mrf.mxu0
  %v346 = vadd.f32 0.0, %v345
  %v347 = vpop.f32.mrf.mxu0
  %v348 = vpop.f32.mrf.mxu0
  %v349 = vadd.f32 0.0, %v348
  %v350 = vpop.f32.mrf.mxu0
  %351 = vmatprep.mubr.bf16.mxu0 0
  %352 = vmatmul.mubr.bf16.gmra.mxu0 %v172
  %v353 = vpop.f32.mrf.mxu0
  %v354 = vadd.f32 0.0, %v353
  %v355 = vpop.f32.mrf.mxu0
  %v356 = vpop.f32.mrf.mxu0
  %v357 = vadd.f32 0.0, %v356
  %v358 = vpop.f32.mrf.mxu0
  %359 = vmatprep.mubr.bf16.mxu0 0
  %360 = vmatmul.mubr.bf16.gmra.mxu0 %v173
  %v361 = vpop.f32.mrf.mxu0
  %v362 = vadd.f32 0.0, %v361
  %v363 = vpop.f32.mrf.mxu0
  %v364 = vpop.f32.mrf.mxu0
  %v365 = vadd.f32 0.0, %v364
  %v366 = vpop.f32.mrf.mxu0
  %367 = vmatprep.mubr.bf16.mxu0 0
  %368 = vmatmul.mubr.bf16.gmra.mxu0 %v174
  %v369 = vpop.f32.mrf.mxu0
  %v370 = vadd.f32 0.0, %v369
  %v371 = vpop.f32.mrf.mxu0
  %v372 = vpop.f32.mrf.mxu0
  %v373 = vadd.f32 0.0, %v372
  %v374 = vpop.f32.mrf.mxu0
  %375 = vmatprep.mubr.bf16.mxu0 0
  %376 = vmatmul.mubr.bf16.gmra.mxu0 %v175
  %v377 = vpop.f32.mrf.mxu0
  %v378 = vadd.f32 0.0, %v377
  %v379 = vpop.f32.mrf.mxu0
  %v380 = vpop.f32.mrf.mxu0
  %v381 = vadd.f32 0.0, %v380
  %v382 = vpop.f32.mrf.mxu0
  %383 = vmatprep.mubr.bf16.mxu0 0
  %384 = vmatmul.mubr.bf16.gmra.mxu0 %v176
  %v385 = vpop.f32.mrf.mxu0
  %v386 = vadd.f32 0.0, %v385
  %v387 = vpop.f32.mrf.mxu0
  %v388 = vpop.f32.mrf.mxu0
  %v389 = vadd.f32 0.0, %v388
  %v390 = vpop.f32.mrf.mxu0
  %391 = vmatprep.mubr.bf16.mxu0 0
  %392 = vmatmul.mubr.bf16.gmra.mxu0 %v177
  %v393 = vpop.f32.mrf.mxu0
  %v394 = vadd.f32 0.0, %v393
  %v395 = vpop.f32.mrf.mxu0
  %v396 = vpop.f32.mrf.mxu0
  %v397 = vadd.f32 0.0, %v396
  %v398 = vpop.f32.mrf.mxu0
  %399 = vmatprep.mubr.bf16.mxu0 0
  %400 = vmatmul.mubr.bf16.gmra.mxu0 %v178
  %v401 = vpop.f32.mrf.mxu0
  %v402 = vadd.f32 0.0, %v401
  %v403 = vpop.f32.mrf.mxu0
  %v404 = vpop.f32.mrf.mxu0
  %v405 = vadd.f32 0.0, %v404
  %v406 = vpop.f32.mrf.mxu0
  %407 = vmatprep.mubr.bf16.mxu0 0
  %408 = vmatmul.mubr.bf16.gmra.mxu0 %v179
  %v409 = vpop.f32.mrf.mxu0
  %v410 = vadd.f32 0.0, %v409
  %v411 = vpop.f32.mrf.mxu0
  %v412 = vpop.f32.mrf.mxu0
  %v413 = vadd.f32 0.0, %v412
  %v414 = vpop.f32.mrf.mxu0
  %415 = vmatprep.mubr.bf16.mxu0 0
  %416 = vmatmul.mubr.bf16.gmra.mxu0 %v180
  %v417 = vpop.f32.mrf.mxu0
  %v418 = vadd.f32 0.0, %v417
  %v419 = vpop.f32.mrf.mxu0
  %v420 = vpop.f32.mrf.mxu0
  %v421 = vadd.f32 0.0, %v420
  %v422 = vpop.f32.mrf.mxu0
  %423 = vdwg.mxu0
  %v424 = vld [vmem:[%s2] sm:$0x1]
  %v426 = vlaneseq
  %v427 = vshrl.u32 %v426, 7
  %v428 = vsub.s32 0, %v427
  %v429 = vrot.slane %v424, %v428
  %v431 = vmul.f32 %v282, %v429
  %v432 = vmul.f32 %v285, %v429
  %v433 = vmul.f32 %v290, %v429
  %v434 = vmul.f32 %v293, %v429
  %v435 = vmul.f32 %v298, %v429
  %v436 = vmul.f32 %v301, %v429
  %v437 = vmul.f32 %v306, %v429
  %v438 = vmul.f32 %v309, %v429
  %v439 = vmul.f32 %v314, %v429
  %v440 = vmul.f32 %v317, %v429
  %v441 = vmul.f32 %v322, %v429
  %v442 = vmul.f32 %v325, %v429
  %v443 = vmul.f32 %v330, %v429
  %v444 = vmul.f32 %v333, %v429
  %v445 = vmul.f32 %v338, %v429
  %v446 = vmul.f32 %v341, %v429
  %v447 = vmul.f32 %v346, %v429
  %v448 = vmul.f32 %v349, %v429
  %v449 = vmul.f32 %v354, %v429
  %v450 = vmul.f32 %v357, %v429
  %v451 = vmul.f32 %v362, %v429
  %v452 = vmul.f32 %v365, %v429
  %v453 = vmul.f32 %v370, %v429
  %v454 = vmul.f32 %v373, %v429
  %v455 = vmul.f32 %v378, %v429
  %v456 = vmul.f32 %v381, %v429
  %v457 = vmul.f32 %v386, %v429
  %v458 = vmul.f32 %v389, %v429
  %v459 = vmul.f32 %v394, %v429
  %v460 = vmul.f32 %v397, %v429
  %v461 = vmul.f32 %v402, %v429
  %v462 = vmul.f32 %v405, %v429
  %v463 = vmul.f32 %v410, %v429
  %v464 = vmul.f32 %v413, %v429
  %v465 = vmul.f32 %v418, %v429
  %v466 = vmul.f32 %v421, %v429
  %v467 = vld [vmem:[%s3] sm:$0x1]
  %v469 = vlaneseq
  %v470 = vshrl.u32 %v469, 7
  %v471 = vsub.s32 0, %v470
  %v472 = vrot.slane %v467, %v471
  %v474 = vadd.f32 %v431, %v472
  %v475 = vadd.f32 %v432, %v472
  %v476 = vadd.f32 %v433, %v472
  %v477 = vadd.f32 %v434, %v472
  %v478 = vadd.f32 %v435, %v472
  %v479 = vadd.f32 %v436, %v472
  %v480 = vadd.f32 %v437, %v472
  %v481 = vadd.f32 %v438, %v472
  %v482 = vadd.f32 %v439, %v472
  %v483 = vadd.f32 %v440, %v472
  %v484 = vadd.f32 %v441, %v472
  %v485 = vadd.f32 %v442, %v472
  %v486 = vadd.f32 %v443, %v472
  %v487 = vadd.f32 %v444, %v472
  %v488 = vadd.f32 %v445, %v472
  %v489 = vadd.f32 %v446, %v472
  %v490 = vadd.f32 %v447, %v472
  %v491 = vadd.f32 %v448, %v472
  %v492 = vadd.f32 %v449, %v472
  %v493 = vadd.f32 %v450, %v472
  %v494 = vadd.f32 %v451, %v472
  %v495 = vadd.f32 %v452, %v472
  %v496 = vadd.f32 %v453, %v472
  %v497 = vadd.f32 %v454, %v472
  %v498 = vadd.f32 %v455, %v472
  %v499 = vadd.f32 %v456, %v472
  %v500 = vadd.f32 %v457, %v472
  %v501 = vadd.f32 %v458, %v472
  %v502 = vadd.f32 %v459, %v472
  %v503 = vadd.f32 %v460, %v472
  %v504 = vadd.f32 %v461, %v472
  %v505 = vadd.f32 %v462, %v472
  %v506 = vadd.f32 %v463, %v472
  %v507 = vadd.f32 %v464, %v472
  %v508 = vadd.f32 %v465, %v472
  %v509 = vadd.f32 %v466, %v472
  %vm510 = vcmp.gt.f32.partialorder %v474, 0.0
  %vm511 = vcmp.gt.f32.partialorder %v475, 0.0
  %vm512 = vcmp.gt.f32.partialorder %v476, 0.0
  %vm513 = vcmp.gt.f32.partialorder %v477, 0.0
  %vm514 = vcmp.gt.f32.partialorder %v478, 0.0
  %vm515 = vcmp.gt.f32.partialorder %v479, 0.0
  %vm516 = vcmp.gt.f32.partialorder %v480, 0.0
  %vm517 = vcmp.gt.f32.partialorder %v481, 0.0
  %vm518 = vcmp.gt.f32.partialorder %v482, 0.0
  %vm519 = vcmp.gt.f32.partialorder %v483, 0.0
  %vm520 = vcmp.gt.f32.partialorder %v484, 0.0
  %vm521 = vcmp.gt.f32.partialorder %v485, 0.0
  %vm522 = vcmp.gt.f32.partialorder %v486, 0.0
  %vm523 = vcmp.gt.f32.partialorder %v487, 0.0
  %vm524 = vcmp.gt.f32.partialorder %v488, 0.0
  %vm525 = vcmp.gt.f32.partialorder %v489, 0.0
  %vm526 = vcmp.gt.f32.partialorder %v490, 0.0
  %vm527 = vcmp.gt.f32.partialorder %v491, 0.0
  %vm528 = vcmp.gt.f32.partialorder %v492, 0.0
  %vm529 = vcmp.gt.f32.partialorder %v493, 0.0
  %vm530 = vcmp.gt.f32.partialorder %v494, 0.0
  %vm531 = vcmp.gt.f32.partialorder %v495, 0.0
  %vm532 = vcmp.gt.f32.partialorder %v496, 0.0
  %vm533 = vcmp.gt.f32.partialorder %v497, 0.0
  %vm534 = vcmp.gt.f32.partialorder %v498, 0.0
  %vm535 = vcmp.gt.f32.partialorder %v499, 0.0
  %vm536 = vcmp.gt.f32.partialorder %v500, 0.0
  %vm537 = vcmp.gt.f32.partialorder %v501, 0.0
  %vm538 = vcmp.gt.f32.partialorder %v502, 0.0
  %vm539 = vcmp.gt.f32.partialorder %v503, 0.0
  %vm540 = vcmp.gt.f32.partialorder %v504, 0.0
  %vm541 = vcmp.gt.f32.partialorder %v505, 0.0
  %vm542 = vcmp.gt.f32.partialorder %v506, 0.0
  %vm543 = vcmp.gt.f32.partialorder %v507, 0.0
  %vm544 = vcmp.gt.f32.partialorder %v508, 0.0
  %vm545 = vcmp.gt.f32.partialorder %v509, 0.0
  %v546 = vmul.f32 %v474, 0.01
  %v547 = vmul.f32 %v475, 0.01
  %v548 = vmul.f32 %v476, 0.01
  %v549 = vmul.f32 %v477, 0.01
  %v550 = vmul.f32 %v478, 0.01
  %v551 = vmul.f32 %v479, 0.01
  %v552 = vmul.f32 %v480, 0.01
  %v553 = vmul.f32 %v481, 0.01
  %v554 = vmul.f32 %v482, 0.01
  %v555 = vmul.f32 %v483, 0.01
  %v556 = vmul.f32 %v484, 0.01
  %v557 = vmul.f32 %v485, 0.01
  %v558 = vmul.f32 %v486, 0.01
  %v559 = vmul.f32 %v487, 0.01
  %v560 = vmul.f32 %v488, 0.01
  %v561 = vmul.f32 %v489, 0.01
  %v562 = vmul.f32 %v490, 0.01
  %v563 = vmul.f32 %v491, 0.01
  %v564 = vmul.f32 %v492, 0.01
  %v565 = vmul.f32 %v493, 0.01
  %v566 = vmul.f32 %v494, 0.01
  %v567 = vmul.f32 %v495, 0.01
  %v568 = vmul.f32 %v496, 0.01
  %v569 = vmul.f32 %v497, 0.01
  %v570 = vmul.f32 %v498, 0.01
  %v571 = vmul.f32 %v499, 0.01
  %v572 = vmul.f32 %v500, 0.01
  %v573 = vmul.f32 %v501, 0.01
  %v574 = vmul.f32 %v502, 0.01
  %v575 = vmul.f32 %v503, 0.01
  %v576 = vmul.f32 %v504, 0.01
  %v577 = vmul.f32 %v505, 0.01
  %v578 = vmul.f32 %v506, 0.01
  %v579 = vmul.f32 %v507, 0.01
  %v580 = vmul.f32 %v508, 0.01
  %v581 = vmul.f32 %v509, 0.01
  %v582 = vsel %vm510, %v474, %v546
  %v583 = vsel %vm511, %v475, %v547
  %v584 = vsel %vm512, %v476, %v548
  %v585 = vsel %vm513, %v477, %v549
  %v586 = vsel %vm514, %v478, %v550
  %v587 = vsel %vm515, %v479, %v551
  %v588 = vsel %vm516, %v480, %v552
  %v589 = vsel %vm517, %v481, %v553
  %v590 = vsel %vm518, %v482, %v554
  %v591 = vsel %vm519, %v483, %v555
  %v592 = vsel %vm520, %v484, %v556
  %v593 = vsel %vm521, %v485, %v557
  %v594 = vsel %vm522, %v486, %v558
  %v595 = vsel %vm523, %v487, %v559
  %v596 = vsel %vm524, %v488, %v560
  %v597 = vsel %vm525, %v489, %v561
  %v598 = vsel %vm526, %v490, %v562
  %v599 = vsel %vm527, %v491, %v563
  %v600 = vsel %vm528, %v492, %v564
  %v601 = vsel %vm529, %v493, %v565
  %v602 = vsel %vm530, %v494, %v566
  %v603 = vsel %vm531, %v495, %v567
  %v604 = vsel %vm532, %v496, %v568
  %v605 = vsel %vm533, %v497, %v569
  %v606 = vsel %vm534, %v498, %v570
  %v607 = vsel %vm535, %v499, %v571
  %v608 = vsel %vm536, %v500, %v572
  %v609 = vsel %vm537, %v501, %v573
  %v610 = vsel %vm538, %v502, %v574
  %v611 = vsel %vm539, %v503, %v575
  %v612 = vsel %vm540, %v504, %v576
  %v613 = vsel %vm541, %v505, %v577
  %v614 = vsel %vm542, %v506, %v578
  %v615 = vsel %vm543, %v507, %v579
  %v616 = vsel %vm544, %v508, %v580
  %v617 = vsel %vm545, %v509, %v581
  %v618 = vpack.c.bf16 %v583, %v582
  %v619 = vpack.c.bf16 %v585, %v584
  %v620 = vpack.c.bf16 %v587, %v586
  %v621 = vpack.c.bf16 %v589, %v588
  %v622 = vpack.c.bf16 %v591, %v590
  %v623 = vpack.c.bf16 %v593, %v592
  %v624 = vpack.c.bf16 %v595, %v594
  %v625 = vpack.c.bf16 %v597, %v596
  %v626 = vpack.c.bf16 %v599, %v598
  %v627 = vpack.c.bf16 %v601, %v600
  %v628 = vpack.c.bf16 %v603, %v602
  %v629 = vpack.c.bf16 %v605, %v604
  %v630 = vpack.c.bf16 %v607, %v606
  %v631 = vpack.c.bf16 %v609, %v608
  %v632 = vpack.c.bf16 %v611, %v610
  %v633 = vpack.c.bf16 %v613, %v612
  %v634 = vpack.c.bf16 %v615, %v614
  %v635 = vpack.c.bf16 %v617, %v616
  %v636 = vld [vmem:[%s4] sm:$0xf]
  %v637 = vld [vmem:[%s4 + $0x4] sm:$0xf]
  %v638 = vld [vmem:[%s4 + $0x8] sm:$0xf]
  %v639 = vld [vmem:[%s4 + $0xc] sm:$0xf]
  %v640 = vld [vmem:[%s4 + $0x10] sm:$0xf]
  %v641 = vld [vmem:[%s4 + $0x14] sm:$0xf]
  %v642 = vld [vmem:[%s4 + $0x18] sm:$0xf]
  %v643 = vld [vmem:[%s4 + $0x1c] sm:$0xf]
  %v644 = vld [vmem:[%s4 + $0x20] sm:$0xf]
  %v645 = vld [vmem:[%s4 + $0x24] sm:$0xf]
  %v646 = vld [vmem:[%s4 + $0x28] sm:$0xf]
  %v647 = vld [vmem:[%s4 + $0x2c] sm:$0xf]
  %v648 = vld [vmem:[%s4 + $0x30] sm:$0xf]
  %v649 = vld [vmem:[%s4 + $0x34] sm:$0xf]
  %v650 = vld [vmem:[%s4 + $0x38] sm:$0xf]
  %v651 = vld [vmem:[%s4 + $0x3c] sm:$0xf]
  %s652 = scalar_lea.vmem %s4, 64
  %v653 = vld [vmem:[%s652] sm:$0xf]
  %v654 = vld [vmem:[%s652 + $0x4] sm:$0xf]
  %v655 = vld [vmem:[%s652 + $0x8] sm:$0xf]
  %v656 = vld [vmem:[%s652 + $0xc] sm:$0xf]
  %v657 = vld [vmem:[%s652 + $0x10] sm:$0xf]
  %v658 = vld [vmem:[%s652 + $0x14] sm:$0xf]
  %v659 = vld [vmem:[%s652 + $0x18] sm:$0xf]
  %v660 = vld [vmem:[%s652 + $0x1c] sm:$0xf]
  %v661 = vld [vmem:[%s652 + $0x20] sm:$0xf]
  %v662 = vld [vmem:[%s652 + $0x24] sm:$0xf]
  %v663 = vld [vmem:[%s652 + $0x28] sm:$0xf]
  %v664 = vld [vmem:[%s652 + $0x2c] sm:$0xf]
  %v665 = vld [vmem:[%s652 + $0x30] sm:$0xf]
  %v666 = vld [vmem:[%s652 + $0x34] sm:$0xf]
  %v667 = vld [vmem:[%s652 + $0x38] sm:$0xf]
  %v668 = vld [vmem:[%s652 + $0x3c] sm:$0xf]
  %v685 = vunpack.c.l.b16 %v653
  %v686 = vunpack.c.l.b16 %v654
  %v687 = vunpack.c.l.b16 %v655
  %v688 = vunpack.c.l.b16 %v656
  %v689 = vunpack.c.l.b16 %v657
  %v690 = vunpack.c.l.b16 %v658
  %v691 = vunpack.c.l.b16 %v659
  %v692 = vunpack.c.l.b16 %v660
  %v693 = vunpack.c.l.b16 %v661
  %v694 = vunpack.c.l.b16 %v662
  %v695 = vunpack.c.l.b16 %v663
  %v696 = vunpack.c.l.b16 %v664
  %v697 = vunpack.c.l.b16 %v665
  %v698 = vunpack.c.l.b16 %v666
  %v699 = vunpack.c.l.b16 %v667
  %v700 = vunpack.c.l.b16 %v668
  %v701 = vpack.c.b16 %v686, %v685
  %v702 = vpack.c.b16 %v688, %v687
  %v703 = vpack.c.b16 %v690, %v689
  %v704 = vpack.c.b16 %v692, %v691
  %v705 = vpack.c.b16 %v694, %v693
  %v706 = vpack.c.b16 %v696, %v695
  %v707 = vpack.c.b16 %v698, %v697
  %v708 = vpack.c.b16 %v700, %v699
  %717 = vmatprep.subr.bf16.mxu0 0
  %718 = vmatpush1.bf16.msra.mxu0 %v708
  %719 = vmatprep.subr.bf16.mxu0 0
  %720 = vmatpush1.bf16.msra.mxu0 %v707
  %721 = vmatprep.subr.bf16.mxu0 0
  %722 = vmatpush1.bf16.msra.mxu0 %v706
  %723 = vmatprep.subr.bf16.mxu0 0
  %724 = vmatpush1.bf16.msra.mxu0 %v705
  %725 = vmatprep.subr.bf16.mxu0 0
  %726 = vmatpush1.bf16.msra.mxu0 %v704
  %727 = vmatprep.subr.bf16.mxu0 0
  %728 = vmatpush1.bf16.msra.mxu0 %v703
  %729 = vmatprep.subr.bf16.mxu0 0
  %730 = vmatpush1.bf16.msra.mxu0 %v702
  %731 = vmatprep.subr.bf16.mxu0 0
  %732 = vmatpush1.bf16.msra.mxu0 %v701
  %733 = vmatprep.subr.bf16.mxu0 0
  %734 = vmatpush2.bf16.msra.mxu0 0
  %735 = vmatprep.subr.bf16.mxu0 0
  %736 = vmatpush2.bf16.msra.mxu0 0
  %737 = vmatprep.subr.bf16.mxu0 0
  %738 = vmatpush2.bf16.msra.mxu0 0
  %739 = vmatprep.subr.bf16.mxu0 0
  %740 = vmatpush2.bf16.msra.mxu0 0
  %741 = vmatprep.subr.bf16.mxu0 0
  %742 = vmatpush2.bf16.msra.mxu0 0
  %743 = vmatprep.subr.bf16.mxu0 0
  %744 = vmatpush2.bf16.msra.mxu0 0
  %745 = vmatprep.subr.bf16.mxu0 0
  %746 = vmatpush2.bf16.msra.mxu0 0
  %747 = vmatprep.subr.bf16.mxu0 0
  %748 = vmatpush2.bf16.msra.mxu0 0
  %749 = vmatprep.mubr.bf16.mxu0 0
  %750 = vmatmul.mubr.bf16.gmra.mxu0 %v620
  %v751 = vpop.f32.mrf.mxu0
  %v752 = vadd.f32 0.0, %v751
  %v753 = vpop.f32.mrf.mxu0
  %v754 = vpop.f32.mrf.mxu0
  %v755 = vadd.f32 0.0, %v754
  %v756 = vpop.f32.mrf.mxu0
  %757 = vmatprep.mubr.bf16.mxu0 0
  %758 = vmatmul.mubr.bf16.gmra.mxu0 %v621
  %v759 = vpop.f32.mrf.mxu0
  %v760 = vadd.f32 0.0, %v759
  %v761 = vpop.f32.mrf.mxu0
  %v762 = vpop.f32.mrf.mxu0
  %v763 = vadd.f32 0.0, %v762
  %v764 = vpop.f32.mrf.mxu0
  %765 = vdwg.mxu0
  %v782 = vunpack.c.l.b16 %v636
  %v783 = vunpack.c.l.b16 %v637
  %v784 = vunpack.c.l.b16 %v638
  %v785 = vunpack.c.l.b16 %v639
  %v786 = vunpack.c.l.b16 %v640
  %v787 = vunpack.c.l.b16 %v641
  %v788 = vunpack.c.l.b16 %v642
  %v789 = vunpack.c.l.b16 %v643
  %v790 = vunpack.c.l.b16 %v644
  %v791 = vunpack.c.l.b16 %v645
  %v792 = vunpack.c.l.b16 %v646
  %v793 = vunpack.c.l.b16 %v647
  %v794 = vunpack.c.l.b16 %v648
  %v795 = vunpack.c.l.b16 %v649
  %v796 = vunpack.c.l.b16 %v650
  %v797 = vunpack.c.l.b16 %v651
  %v798 = vpack.c.b16 %v783, %v782
  %v799 = vpack.c.b16 %v785, %v784
  %v800 = vpack.c.b16 %v787, %v786
  %v801 = vpack.c.b16 %v789, %v788
  %v802 = vpack.c.b16 %v791, %v790
  %v803 = vpack.c.b16 %v793, %v792
  %v804 = vpack.c.b16 %v795, %v794
  %v805 = vpack.c.b16 %v797, %v796
  %814 = vmatprep.subr.bf16.mxu0 0
  %815 = vmatpush1.bf16.msra.mxu0 %v805
  %816 = vmatprep.subr.bf16.mxu0 0
  %817 = vmatpush1.bf16.msra.mxu0 %v804
  %818 = vmatprep.subr.bf16.mxu0 0
  %819 = vmatpush1.bf16.msra.mxu0 %v803
  %820 = vmatprep.subr.bf16.mxu0 0
  %821 = vmatpush1.bf16.msra.mxu0 %v802
  %822 = vmatprep.subr.bf16.mxu0 0
  %823 = vmatpush1.bf16.msra.mxu0 %v801
  %824 = vmatprep.subr.bf16.mxu0 0
  %825 = vmatpush1.bf16.msra.mxu0 %v800
  %826 = vmatprep.subr.bf16.mxu0 0
  %827 = vmatpush1.bf16.msra.mxu0 %v799
  %828 = vmatprep.subr.bf16.mxu0 0
  %829 = vmatpush1.bf16.msra.mxu0 %v798
  %830 = vmatprep.subr.bf16.mxu0 0
  %831 = vmatpush2.bf16.msra.mxu0 0
  %832 = vmatprep.subr.bf16.mxu0 0
  %833 = vmatpush2.bf16.msra.mxu0 0
  %834 = vmatprep.subr.bf16.mxu0 0
  %835 = vmatpush2.bf16.msra.mxu0 0
  %836 = vmatprep.subr.bf16.mxu0 0
  %837 = vmatpush2.bf16.msra.mxu0 0
  %838 = vmatprep.subr.bf16.mxu0 0
  %839 = vmatpush2.bf16.msra.mxu0 0
  %840 = vmatprep.subr.bf16.mxu0 0
  %841 = vmatpush2.bf16.msra.mxu0 0
  %842 = vmatprep.subr.bf16.mxu0 0
  %843 = vmatpush2.bf16.msra.mxu0 0
  %844 = vmatprep.subr.bf16.mxu0 0
  %845 = vmatpush2.bf16.msra.mxu0 0
  %846 = vmatprep.mubr.bf16.mxu0 0
  %847 = vmatmul.mubr.bf16.gmra.mxu0 %v618
  %v848 = vpop.f32.mrf.mxu0
  %v849 = vadd.f32 %v752, %v848
  %v850 = vpop.f32.mrf.mxu0
  %v851 = vpop.f32.mrf.mxu0
  %v852 = vadd.f32 %v755, %v851
  %v853 = vpop.f32.mrf.mxu0
  %854 = vmatprep.mubr.bf16.mxu0 0
  %855 = vmatmul.mubr.bf16.gmra.mxu0 %v619
  %v856 = vpop.f32.mrf.mxu0
  %v857 = vadd.f32 %v760, %v856
  %v858 = vpop.f32.mrf.mxu0
  %v859 = vpop.f32.mrf.mxu0
  %v860 = vadd.f32 %v763, %v859
  %v861 = vpop.f32.mrf.mxu0
  %862 = vdwg.mxu0
  %s863 = scalar_lea.vmem %s4, 128
  %v864 = vld [vmem:[%s863] sm:$0xf]
  %v865 = vld [vmem:[%s863 + $0x4] sm:$0xf]
  %v866 = vld [vmem:[%s863 + $0x8] sm:$0xf]
  %v867 = vld [vmem:[%s863 + $0xc] sm:$0xf]
  %v868 = vld [vmem:[%s863 + $0x10] sm:$0xf]
  %v869 = vld [vmem:[%s863 + $0x14] sm:$0xf]
  %v870 = vld [vmem:[%s863 + $0x18] sm:$0xf]
  %v871 = vld [vmem:[%s863 + $0x1c] sm:$0xf]
  %v872 = vld [vmem:[%s863 + $0x20] sm:$0xf]
  %v873 = vld [vmem:[%s863 + $0x24] sm:$0xf]
  %v874 = vld [vmem:[%s863 + $0x28] sm:$0xf]
  %v875 = vld [vmem:[%s863 + $0x2c] sm:$0xf]
  %v876 = vld [vmem:[%s863 + $0x30] sm:$0xf]
  %v877 = vld [vmem:[%s863 + $0x34] sm:$0xf]
  %v878 = vld [vmem:[%s863 + $0x38] sm:$0xf]
  %v879 = vld [vmem:[%s863 + $0x3c] sm:$0xf]
  %v896 = vunpack.c.l.b16 %v864
  %v897 = vunpack.c.l.b16 %v865
  %v898 = vunpack.c.l.b16 %v866
  %v899 = vunpack.c.l.b16 %v867
  %v900 = vunpack.c.l.b16 %v868
  %v901 = vunpack.c.l.b16 %v869
  %v902 = vunpack.c.l.b16 %v870
  %v903 = vunpack.c.l.b16 %v871
  %v904 = vunpack.c.l.b16 %v872
  %v905 = vunpack.c.l.b16 %v873
  %v906 = vunpack.c.l.b16 %v874
  %v907 = vunpack.c.l.b16 %v875
  %v908 = vunpack.c.l.b16 %v876
  %v909 = vunpack.c.l.b16 %v877
  %v910 = vunpack.c.l.b16 %v878
  %v911 = vunpack.c.l.b16 %v879
  %v912 = vpack.c.b16 %v897, %v896
  %v913 = vpack.c.b16 %v899, %v898
  %v914 = vpack.c.b16 %v901, %v900
  %v915 = vpack.c.b16 %v903, %v902
  %v916 = vpack.c.b16 %v905, %v904
  %v917 = vpack.c.b16 %v907, %v906
  %v918 = vpack.c.b16 %v909, %v908
  %v919 = vpack.c.b16 %v911, %v910
  %928 = vmatprep.subr.bf16.mxu0 0
  %929 = vmatpush1.bf16.msra.mxu0 %v919
  %930 = vmatprep.subr.bf16.mxu0 0
  %931 = vmatpush1.bf16.msra.mxu0 %v918
  %932 = vmatprep.subr.bf16.mxu0 0
  %933 = vmatpush1.bf16.msra.mxu0 %v917
  %934 = vmatprep.subr.bf16.mxu0 0
  %935 = vmatpush1.bf16.msra.mxu0 %v916
  %936 = vmatprep.subr.bf16.mxu0 0
  %937 = vmatpush1.bf16.msra.mxu0 %v915
  %938 = vmatprep.subr.bf16.mxu0 0
  %939 = vmatpush1.bf16.msra.mxu0 %v914
  %940 = vmatprep.subr.bf16.mxu0 0
  %941 = vmatpush1.bf16.msra.mxu0 %v913
  %942 = vmatprep.subr.bf16.mxu0 0
  %943 = vmatpush1.bf16.msra.mxu0 %v912
  %944 = vmatprep.subr.bf16.mxu0 0
  %945 = vmatpush2.bf16.msra.mxu0 0
  %946 = vmatprep.subr.bf16.mxu0 0
  %947 = vmatpush2.bf16.msra.mxu0 0
  %948 = vmatprep.subr.bf16.mxu0 0
  %949 = vmatpush2.bf16.msra.mxu0 0
  %950 = vmatprep.subr.bf16.mxu0 0
  %951 = vmatpush2.bf16.msra.mxu0 0
  %952 = vmatprep.subr.bf16.mxu0 0
  %953 = vmatpush2.bf16.msra.mxu0 0
  %954 = vmatprep.subr.bf16.mxu0 0
  %955 = vmatpush2.bf16.msra.mxu0 0
  %956 = vmatprep.subr.bf16.mxu0 0
  %957 = vmatpush2.bf16.msra.mxu0 0
  %958 = vmatprep.subr.bf16.mxu0 0
  %959 = vmatpush2.bf16.msra.mxu0 0
  %960 = vmatprep.mubr.bf16.mxu0 0
  %961 = vmatmul.mubr.bf16.gmra.mxu0 %v622
  %v962 = vpop.f32.mrf.mxu0
  %v963 = vadd.f32 0.0, %v962
  %v964 = vpop.f32.mrf.mxu0
  %v965 = vpop.f32.mrf.mxu0
  %v966 = vadd.f32 0.0, %v965
  %v967 = vpop.f32.mrf.mxu0
  %968 = vmatprep.mubr.bf16.mxu0 0
  %969 = vmatmul.mubr.bf16.gmra.mxu0 %v623
  %v970 = vpop.f32.mrf.mxu0
  %v971 = vadd.f32 0.0, %v970
  %v972 = vpop.f32.mrf.mxu0
  %v973 = vpop.f32.mrf.mxu0
  %v974 = vadd.f32 0.0, %v973
  %v975 = vpop.f32.mrf.mxu0
  %976 = vdwg.mxu0
  %v977 = vadd.f32 %v849, %v963
  %v978 = vadd.f32 %v852, %v966
  %v979 = vadd.f32 %v857, %v971
  %v980 = vadd.f32 %v860, %v974
  %s981 = scalar_lea.vmem %s4, 192
  %v982 = vld [vmem:[%s981] sm:$0xf]
  %v983 = vld [vmem:[%s981 + $0x4] sm:$0xf]
  %v984 = vld [vmem:[%s981 + $0x8] sm:$0xf]
  %v985 = vld [vmem:[%s981 + $0xc] sm:$0xf]
  %v986 = vld [vmem:[%s981 + $0x10] sm:$0xf]
  %v987 = vld [vmem:[%s981 + $0x14] sm:$0xf]
  %v988 = vld [vmem:[%s981 + $0x18] sm:$0xf]
  %v989 = vld [vmem:[%s981 + $0x1c] sm:$0xf]
  %v990 = vld [vmem:[%s981 + $0x20] sm:$0xf]
  %v991 = vld [vmem:[%s981 + $0x24] sm:$0xf]
  %v992 = vld [vmem:[%s981 + $0x28] sm:$0xf]
  %v993 = vld [vmem:[%s981 + $0x2c] sm:$0xf]
  %v994 = vld [vmem:[%s981 + $0x30] sm:$0xf]
  %v995 = vld [vmem:[%s981 + $0x34] sm:$0xf]
  %v996 = vld [vmem:[%s981 + $0x38] sm:$0xf]
  %v997 = vld [vmem:[%s981 + $0x3c] sm:$0xf]
  %v1014 = vunpack.c.l.b16 %v982
  %v1015 = vunpack.c.l.b16 %v983
  %v1016 = vunpack.c.l.b16 %v984
  %v1017 = vunpack.c.l.b16 %v985
  %v1018 = vunpack.c.l.b16 %v986
  %v1019 = vunpack.c.l.b16 %v987
  %v1020 = vunpack.c.l.b16 %v988
  %v1021 = vunpack.c.l.b16 %v989
  %v1022 = vunpack.c.l.b16 %v990
  %v1023 = vunpack.c.l.b16 %v991
  %v1024 = vunpack.c.l.b16 %v992
  %v1025 = vunpack.c.l.b16 %v993
  %v1026 = vunpack.c.l.b16 %v994
  %v1027 = vunpack.c.l.b16 %v995
  %v1028 = vunpack.c.l.b16 %v996
  %v1029 = vunpack.c.l.b16 %v997
  %v1030 = vpack.c.b16 %v1015, %v1014
  %v1031 = vpack.c.b16 %v1017, %v1016
  %v1032 = vpack.c.b16 %v1019, %v1018
  %v1033 = vpack.c.b16 %v1021, %v1020
  %v1034 = vpack.c.b16 %v1023, %v1022
  %v1035 = vpack.c.b16 %v1025, %v1024
  %v1036 = vpack.c.b16 %v1027, %v1026
  %v1037 = vpack.c.b16 %v1029, %v1028
  %1046 = vmatprep.subr.bf16.mxu0 0
  %1047 = vmatpush1.bf16.msra.mxu0 %v1037
  %1048 = vmatprep.subr.bf16.mxu0 0
  %1049 = vmatpush1.bf16.msra.mxu0 %v1036
  %1050 = vmatprep.subr.bf16.mxu0 0
  %1051 = vmatpush1.bf16.msra.mxu0 %v1035
  %1052 = vmatprep.subr.bf16.mxu0 0
  %1053 = vmatpush1.bf16.msra.mxu0 %v1034
  %1054 = vmatprep.subr.bf16.mxu0 0
  %1055 = vmatpush1.bf16.msra.mxu0 %v1033
  %1056 = vmatprep.subr.bf16.mxu0 0
  %1057 = vmatpush1.bf16.msra.mxu0 %v1032
  %1058 = vmatprep.subr.bf16.mxu0 0
  %1059 = vmatpush1.bf16.msra.mxu0 %v1031
  %1060 = vmatprep.subr.bf16.mxu0 0
  %1061 = vmatpush1.bf16.msra.mxu0 %v1030
  %1062 = vmatprep.subr.bf16.mxu0 0
  %1063 = vmatpush2.bf16.msra.mxu0 0
  %1064 = vmatprep.subr.bf16.mxu0 0
  %1065 = vmatpush2.bf16.msra.mxu0 0
  %1066 = vmatprep.subr.bf16.mxu0 0
  %1067 = vmatpush2.bf16.msra.mxu0 0
  %1068 = vmatprep.subr.bf16.mxu0 0
  %1069 = vmatpush2.bf16.msra.mxu0 0
  %1070 = vmatprep.subr.bf16.mxu0 0
  %1071 = vmatpush2.bf16.msra.mxu0 0
  %1072 = vmatprep.subr.bf16.mxu0 0
  %1073 = vmatpush2.bf16.msra.mxu0 0
  %1074 = vmatprep.subr.bf16.mxu0 0
  %1075 = vmatpush2.bf16.msra.mxu0 0
  %1076 = vmatprep.subr.bf16.mxu0 0
  %1077 = vmatpush2.bf16.msra.mxu0 0
  %1078 = vmatprep.mubr.bf16.mxu0 0
  %1079 = vmatmul.mubr.bf16.gmra.mxu0 %v624
  %v1080 = vpop.f32.mrf.mxu0
  %v1081 = vadd.f32 0.0, %v1080
  %v1082 = vpop.f32.mrf.mxu0
  %v1083 = vpop.f32.mrf.mxu0
  %v1084 = vadd.f32 0.0, %v1083
  %v1085 = vpop.f32.mrf.mxu0
  %1086 = vmatprep.mubr.bf16.mxu0 0
  %1087 = vmatmul.mubr.bf16.gmra.mxu0 %v625
  %v1088 = vpop.f32.mrf.mxu0
  %v1089 = vadd.f32 0.0, %v1088
  %v1090 = vpop.f32.mrf.mxu0
  %v1091 = vpop.f32.mrf.mxu0
  %v1092 = vadd.f32 0.0, %v1091
  %v1093 = vpop.f32.mrf.mxu0
  %1094 = vdwg.mxu0
  %v1095 = vadd.f32 %v977, %v1081
  %v1096 = vadd.f32 %v978, %v1084
  %v1097 = vadd.f32 %v979, %v1089
  %v1098 = vadd.f32 %v980, %v1092
  %s1099 = scalar_lea.vmem %s4, 256
  %v1100 = vld [vmem:[%s1099] sm:$0xf]
  %v1101 = vld [vmem:[%s1099 + $0x4] sm:$0xf]
  %v1102 = vld [vmem:[%s1099 + $0x8] sm:$0xf]
  %v1103 = vld [vmem:[%s1099 + $0xc] sm:$0xf]
  %v1104 = vld [vmem:[%s1099 + $0x10] sm:$0xf]
  %v1105 = vld [vmem:[%s1099 + $0x14] sm:$0xf]
  %v1106 = vld [vmem:[%s1099 + $0x18] sm:$0xf]
  %v1107 = vld [vmem:[%s1099 + $0x1c] sm:$0xf]
  %v1108 = vld [vmem:[%s1099 + $0x20] sm:$0xf]
  %v1109 = vld [vmem:[%s1099 + $0x24] sm:$0xf]
  %v1110 = vld [vmem:[%s1099 + $0x28] sm:$0xf]
  %v1111 = vld [vmem:[%s1099 + $0x2c] sm:$0xf]
  %v1112 = vld [vmem:[%s1099 + $0x30] sm:$0xf]
  %v1113 = vld [vmem:[%s1099 + $0x34] sm:$0xf]
  %v1114 = vld [vmem:[%s1099 + $0x38] sm:$0xf]
  %v1115 = vld [vmem:[%s1099 + $0x3c] sm:$0xf]
  %v1132 = vunpack.c.l.b16 %v1100
  %v1133 = vunpack.c.l.b16 %v1101
  %v1134 = vunpack.c.l.b16 %v1102
  %v1135 = vunpack.c.l.b16 %v1103
  %v1136 = vunpack.c.l.b16 %v1104
  %v1137 = vunpack.c.l.b16 %v1105
  %v1138 = vunpack.c.l.b16 %v1106
  %v1139 = vunpack.c.l.b16 %v1107
  %v1140 = vunpack.c.l.b16 %v1108
  %v1141 = vunpack.c.l.b16 %v1109
  %v1142 = vunpack.c.l.b16 %v1110
  %v1143 = vunpack.c.l.b16 %v1111
  %v1144 = vunpack.c.l.b16 %v1112
  %v1145 = vunpack.c.l.b16 %v1113
  %v1146 = vunpack.c.l.b16 %v1114
  %v1147 = vunpack.c.l.b16 %v1115
  %v1148 = vpack.c.b16 %v1133, %v1132
  %v1149 = vpack.c.b16 %v1135, %v1134
  %v1150 = vpack.c.b16 %v1137, %v1136
  %v1151 = vpack.c.b16 %v1139, %v1138
  %v1152 = vpack.c.b16 %v1141, %v1140
  %v1153 = vpack.c.b16 %v1143, %v1142
  %v1154 = vpack.c.b16 %v1145, %v1144
  %v1155 = vpack.c.b16 %v1147, %v1146
  %1164 = vmatprep.subr.bf16.mxu0 0
  %1165 = vmatpush1.bf16.msra.mxu0 %v1155
  %1166 = vmatprep.subr.bf16.mxu0 0
  %1167 = vmatpush1.bf16.msra.mxu0 %v1154
  %1168 = vmatprep.subr.bf16.mxu0 0
  %1169 = vmatpush1.bf16.msra.mxu0 %v1153
  %1170 = vmatprep.subr.bf16.mxu0 0
  %1171 = vmatpush1.bf16.msra.mxu0 %v1152
  %1172 = vmatprep.subr.bf16.mxu0 0
  %1173 = vmatpush1.bf16.msra.mxu0 %v1151
  %1174 = vmatprep.subr.bf16.mxu0 0
  %1175 = vmatpush1.bf16.msra.mxu0 %v1150
  %1176 = vmatprep.subr.bf16.mxu0 0
  %1177 = vmatpush1.bf16.msra.mxu0 %v1149
  %1178 = vmatprep.subr.bf16.mxu0 0
  %1179 = vmatpush1.bf16.msra.mxu0 %v1148
  %1180 = vmatprep.subr.bf16.mxu0 0
  %1181 = vmatpush2.bf16.msra.mxu0 0
  %1182 = vmatprep.subr.bf16.mxu0 0
  %1183 = vmatpush2.bf16.msra.mxu0 0
  %1184 = vmatprep.subr.bf16.mxu0 0
  %1185 = vmatpush2.bf16.msra.mxu0 0
  %1186 = vmatprep.subr.bf16.mxu0 0
  %1187 = vmatpush2.bf16.msra.mxu0 0
  %1188 = vmatprep.subr.bf16.mxu0 0
  %1189 = vmatpush2.bf16.msra.mxu0 0
  %1190 = vmatprep.subr.bf16.mxu0 0
  %1191 = vmatpush2.bf16.msra.mxu0 0
  %1192 = vmatprep.subr.bf16.mxu0 0
  %1193 = vmatpush2.bf16.msra.mxu0 0
  %1194 = vmatprep.subr.bf16.mxu0 0
  %1195 = vmatpush2.bf16.msra.mxu0 0
  %1196 = vmatprep.mubr.bf16.mxu0 0
  %1197 = vmatmul.mubr.bf16.gmra.mxu0 %v626
  %v1198 = vpop.f32.mrf.mxu0
  %v1199 = vadd.f32 0.0, %v1198
  %v1200 = vpop.f32.mrf.mxu0
  %v1201 = vpop.f32.mrf.mxu0
  %v1202 = vadd.f32 0.0, %v1201
  %v1203 = vpop.f32.mrf.mxu0
  %1204 = vmatprep.mubr.bf16.mxu0 0
  %1205 = vmatmul.mubr.bf16.gmra.mxu0 %v627
  %v1206 = vpop.f32.mrf.mxu0
  %v1207 = vadd.f32 0.0, %v1206
  %v1208 = vpop.f32.mrf.mxu0
  %v1209 = vpop.f32.mrf.mxu0
  %v1210 = vadd.f32 0.0, %v1209
  %v1211 = vpop.f32.mrf.mxu0
  %1212 = vdwg.mxu0
  %v1213 = vadd.f32 %v1095, %v1199
  %v1214 = vadd.f32 %v1096, %v1202
  %v1215 = vadd.f32 %v1097, %v1207
  %v1216 = vadd.f32 %v1098, %v1210
  %s1217 = scalar_lea.vmem %s4, 320
  %v1218 = vld [vmem:[%s1217] sm:$0xf]
  %v1219 = vld [vmem:[%s1217 + $0x4] sm:$0xf]
  %v1220 = vld [vmem:[%s1217 + $0x8] sm:$0xf]
  %v1221 = vld [vmem:[%s1217 + $0xc] sm:$0xf]
  %v1222 = vld [vmem:[%s1217 + $0x10] sm:$0xf]
  %v1223 = vld [vmem:[%s1217 + $0x14] sm:$0xf]
  %v1224 = vld [vmem:[%s1217 + $0x18] sm:$0xf]
  %v1225 = vld [vmem:[%s1217 + $0x1c] sm:$0xf]
  %v1226 = vld [vmem:[%s1217 + $0x20] sm:$0xf]
  %v1227 = vld [vmem:[%s1217 + $0x24] sm:$0xf]
  %v1228 = vld [vmem:[%s1217 + $0x28] sm:$0xf]
  %v1229 = vld [vmem:[%s1217 + $0x2c] sm:$0xf]
  %v1230 = vld [vmem:[%s1217 + $0x30] sm:$0xf]
  %v1231 = vld [vmem:[%s1217 + $0x34] sm:$0xf]
  %v1232 = vld [vmem:[%s1217 + $0x38] sm:$0xf]
  %v1233 = vld [vmem:[%s1217 + $0x3c] sm:$0xf]
  %v1250 = vunpack.c.l.b16 %v1218
  %v1251 = vunpack.c.l.b16 %v1219
  %v1252 = vunpack.c.l.b16 %v1220
  %v1253 = vunpack.c.l.b16 %v1221
  %v1254 = vunpack.c.l.b16 %v1222
  %v1255 = vunpack.c.l.b16 %v1223
  %v1256 = vunpack.c.l.b16 %v1224
  %v1257 = vunpack.c.l.b16 %v1225
  %v1258 = vunpack.c.l.b16 %v1226
  %v1259 = vunpack.c.l.b16 %v1227
  %v1260 = vunpack.c.l.b16 %v1228
  %v1261 = vunpack.c.l.b16 %v1229
  %v1262 = vunpack.c.l.b16 %v1230
  %v1263 = vunpack.c.l.b16 %v1231
  %v1264 = vunpack.c.l.b16 %v1232
  %v1265 = vunpack.c.l.b16 %v1233
  %v1266 = vpack.c.b16 %v1251, %v1250
  %v1267 = vpack.c.b16 %v1253, %v1252
  %v1268 = vpack.c.b16 %v1255, %v1254
  %v1269 = vpack.c.b16 %v1257, %v1256
  %v1270 = vpack.c.b16 %v1259, %v1258
  %v1271 = vpack.c.b16 %v1261, %v1260
  %v1272 = vpack.c.b16 %v1263, %v1262
  %v1273 = vpack.c.b16 %v1265, %v1264
  %1282 = vmatprep.subr.bf16.mxu0 0
  %1283 = vmatpush1.bf16.msra.mxu0 %v1273
  %1284 = vmatprep.subr.bf16.mxu0 0
  %1285 = vmatpush1.bf16.msra.mxu0 %v1272
  %1286 = vmatprep.subr.bf16.mxu0 0
  %1287 = vmatpush1.bf16.msra.mxu0 %v1271
  %1288 = vmatprep.subr.bf16.mxu0 0
  %1289 = vmatpush1.bf16.msra.mxu0 %v1270
  %1290 = vmatprep.subr.bf16.mxu0 0
  %1291 = vmatpush1.bf16.msra.mxu0 %v1269
  %1292 = vmatprep.subr.bf16.mxu0 0
  %1293 = vmatpush1.bf16.msra.mxu0 %v1268
  %1294 = vmatprep.subr.bf16.mxu0 0
  %1295 = vmatpush1.bf16.msra.mxu0 %v1267
  %1296 = vmatprep.subr.bf16.mxu0 0
  %1297 = vmatpush1.bf16.msra.mxu0 %v1266
  %1298 = vmatprep.subr.bf16.mxu0 0
  %1299 = vmatpush2.bf16.msra.mxu0 0
  %1300 = vmatprep.subr.bf16.mxu0 0
  %1301 = vmatpush2.bf16.msra.mxu0 0
  %1302 = vmatprep.subr.bf16.mxu0 0
  %1303 = vmatpush2.bf16.msra.mxu0 0
  %1304 = vmatprep.subr.bf16.mxu0 0
  %1305 = vmatpush2.bf16.msra.mxu0 0
  %1306 = vmatprep.subr.bf16.mxu0 0
  %1307 = vmatpush2.bf16.msra.mxu0 0
  %1308 = vmatprep.subr.bf16.mxu0 0
  %1309 = vmatpush2.bf16.msra.mxu0 0
  %1310 = vmatprep.subr.bf16.mxu0 0
  %1311 = vmatpush2.bf16.msra.mxu0 0
  %1312 = vmatprep.subr.bf16.mxu0 0
  %1313 = vmatpush2.bf16.msra.mxu0 0
  %1314 = vmatprep.mubr.bf16.mxu0 0
  %1315 = vmatmul.mubr.bf16.gmra.mxu0 %v628
  %v1316 = vpop.f32.mrf.mxu0
  %v1317 = vadd.f32 0.0, %v1316
  %v1318 = vpop.f32.mrf.mxu0
  %v1319 = vpop.f32.mrf.mxu0
  %v1320 = vadd.f32 0.0, %v1319
  %v1321 = vpop.f32.mrf.mxu0
  %1322 = vmatprep.mubr.bf16.mxu0 0
  %1323 = vmatmul.mubr.bf16.gmra.mxu0 %v629
  %v1324 = vpop.f32.mrf.mxu0
  %v1325 = vadd.f32 0.0, %v1324
  %v1326 = vpop.f32.mrf.mxu0
  %v1327 = vpop.f32.mrf.mxu0
  %v1328 = vadd.f32 0.0, %v1327
  %v1329 = vpop.f32.mrf.mxu0
  %1330 = vdwg.mxu0
  %v1331 = vadd.f32 %v1213, %v1317
  %v1332 = vadd.f32 %v1214, %v1320
  %v1333 = vadd.f32 %v1215, %v1325
  %v1334 = vadd.f32 %v1216, %v1328
  %s1335 = scalar_lea.vmem %s4, 384
  %v1336 = vld [vmem:[%s1335] sm:$0xf]
  %v1337 = vld [vmem:[%s1335 + $0x4] sm:$0xf]
  %v1338 = vld [vmem:[%s1335 + $0x8] sm:$0xf]
  %v1339 = vld [vmem:[%s1335 + $0xc] sm:$0xf]
  %v1340 = vld [vmem:[%s1335 + $0x10] sm:$0xf]
  %v1341 = vld [vmem:[%s1335 + $0x14] sm:$0xf]
  %v1342 = vld [vmem:[%s1335 + $0x18] sm:$0xf]
  %v1343 = vld [vmem:[%s1335 + $0x1c] sm:$0xf]
  %v1344 = vld [vmem:[%s1335 + $0x20] sm:$0xf]
  %v1345 = vld [vmem:[%s1335 + $0x24] sm:$0xf]
  %v1346 = vld [vmem:[%s1335 + $0x28] sm:$0xf]
  %v1347 = vld [vmem:[%s1335 + $0x2c] sm:$0xf]
  %v1348 = vld [vmem:[%s1335 + $0x30] sm:$0xf]
  %v1349 = vld [vmem:[%s1335 + $0x34] sm:$0xf]
  %v1350 = vld [vmem:[%s1335 + $0x38] sm:$0xf]
  %v1351 = vld [vmem:[%s1335 + $0x3c] sm:$0xf]
  %v1368 = vunpack.c.l.b16 %v1336
  %v1369 = vunpack.c.l.b16 %v1337
  %v1370 = vunpack.c.l.b16 %v1338
  %v1371 = vunpack.c.l.b16 %v1339
  %v1372 = vunpack.c.l.b16 %v1340
  %v1373 = vunpack.c.l.b16 %v1341
  %v1374 = vunpack.c.l.b16 %v1342
  %v1375 = vunpack.c.l.b16 %v1343
  %v1376 = vunpack.c.l.b16 %v1344
  %v1377 = vunpack.c.l.b16 %v1345
  %v1378 = vunpack.c.l.b16 %v1346
  %v1379 = vunpack.c.l.b16 %v1347
  %v1380 = vunpack.c.l.b16 %v1348
  %v1381 = vunpack.c.l.b16 %v1349
  %v1382 = vunpack.c.l.b16 %v1350
  %v1383 = vunpack.c.l.b16 %v1351
  %v1384 = vpack.c.b16 %v1369, %v1368
  %v1385 = vpack.c.b16 %v1371, %v1370
  %v1386 = vpack.c.b16 %v1373, %v1372
  %v1387 = vpack.c.b16 %v1375, %v1374
  %v1388 = vpack.c.b16 %v1377, %v1376
  %v1389 = vpack.c.b16 %v1379, %v1378
  %v1390 = vpack.c.b16 %v1381, %v1380
  %v1391 = vpack.c.b16 %v1383, %v1382
  %1400 = vmatprep.subr.bf16.mxu0 0
  %1401 = vmatpush1.bf16.msra.mxu0 %v1391
  %1402 = vmatprep.subr.bf16.mxu0 0
  %1403 = vmatpush1.bf16.msra.mxu0 %v1390
  %1404 = vmatprep.subr.bf16.mxu0 0
  %1405 = vmatpush1.bf16.msra.mxu0 %v1389
  %1406 = vmatprep.subr.bf16.mxu0 0
  %1407 = vmatpush1.bf16.msra.mxu0 %v1388
  %1408 = vmatprep.subr.bf16.mxu0 0
  %1409 = vmatpush1.bf16.msra.mxu0 %v1387
  %1410 = vmatprep.subr.bf16.mxu0 0
  %1411 = vmatpush1.bf16.msra.mxu0 %v1386
  %1412 = vmatprep.subr.bf16.mxu0 0
  %1413 = vmatpush1.bf16.msra.mxu0 %v1385
  %1414 = vmatprep.subr.bf16.mxu0 0
  %1415 = vmatpush1.bf16.msra.mxu0 %v1384
  %1416 = vmatprep.subr.bf16.mxu0 0
  %1417 = vmatpush2.bf16.msra.mxu0 0
  %1418 = vmatprep.subr.bf16.mxu0 0
  %1419 = vmatpush2.bf16.msra.mxu0 0
  %1420 = vmatprep.subr.bf16.mxu0 0
  %1421 = vmatpush2.bf16.msra.mxu0 0
  %1422 = vmatprep.subr.bf16.mxu0 0
  %1423 = vmatpush2.bf16.msra.mxu0 0
  %1424 = vmatprep.subr.bf16.mxu0 0
  %1425 = vmatpush2.bf16.msra.mxu0 0
  %1426 = vmatprep.subr.bf16.mxu0 0
  %1427 = vmatpush2.bf16.msra.mxu0 0
  %1428 = vmatprep.subr.bf16.mxu0 0
  %1429 = vmatpush2.bf16.msra.mxu0 0
  %1430 = vmatprep.subr.bf16.mxu0 0
  %1431 = vmatpush2.bf16.msra.mxu0 0
  %1432 = vmatprep.mubr.bf16.mxu0 0
  %1433 = vmatmul.mubr.bf16.gmra.mxu0 %v630
  %v1434 = vpop.f32.mrf.mxu0
  %v1435 = vadd.f32 0.0, %v1434
  %v1436 = vpop.f32.mrf.mxu0
  %v1437 = vpop.f32.mrf.mxu0
  %v1438 = vadd.f32 0.0, %v1437
  %v1439 = vpop.f32.mrf.mxu0
  %1440 = vmatprep.mubr.bf16.mxu0 0
  %1441 = vmatmul.mubr.bf16.gmra.mxu0 %v631
  %v1442 = vpop.f32.mrf.mxu0
  %v1443 = vadd.f32 0.0, %v1442
  %v1444 = vpop.f32.mrf.mxu0
  %v1445 = vpop.f32.mrf.mxu0
  %v1446 = vadd.f32 0.0, %v1445
  %v1447 = vpop.f32.mrf.mxu0
  %1448 = vdwg.mxu0
  %v1449 = vadd.f32 %v1331, %v1435
  %v1450 = vadd.f32 %v1332, %v1438
  %v1451 = vadd.f32 %v1333, %v1443
  %v1452 = vadd.f32 %v1334, %v1446
  %s1453 = scalar_lea.vmem %s4, 448
  %v1454 = vld [vmem:[%s1453] sm:$0xf]
  %v1455 = vld [vmem:[%s1453 + $0x4] sm:$0xf]
  %v1456 = vld [vmem:[%s1453 + $0x8] sm:$0xf]
  %v1457 = vld [vmem:[%s1453 + $0xc] sm:$0xf]
  %v1458 = vld [vmem:[%s1453 + $0x10] sm:$0xf]
  %v1459 = vld [vmem:[%s1453 + $0x14] sm:$0xf]
  %v1460 = vld [vmem:[%s1453 + $0x18] sm:$0xf]
  %v1461 = vld [vmem:[%s1453 + $0x1c] sm:$0xf]
  %v1462 = vld [vmem:[%s1453 + $0x20] sm:$0xf]
  %v1463 = vld [vmem:[%s1453 + $0x24] sm:$0xf]
  %v1464 = vld [vmem:[%s1453 + $0x28] sm:$0xf]
  %v1465 = vld [vmem:[%s1453 + $0x2c] sm:$0xf]
  %v1466 = vld [vmem:[%s1453 + $0x30] sm:$0xf]
  %v1467 = vld [vmem:[%s1453 + $0x34] sm:$0xf]
  %v1468 = vld [vmem:[%s1453 + $0x38] sm:$0xf]
  %v1469 = vld [vmem:[%s1453 + $0x3c] sm:$0xf]
  %v1486 = vunpack.c.l.b16 %v1454
  %v1487 = vunpack.c.l.b16 %v1455
  %v1488 = vunpack.c.l.b16 %v1456
  %v1489 = vunpack.c.l.b16 %v1457
  %v1490 = vunpack.c.l.b16 %v1458
  %v1491 = vunpack.c.l.b16 %v1459
  %v1492 = vunpack.c.l.b16 %v1460
  %v1493 = vunpack.c.l.b16 %v1461
  %v1494 = vunpack.c.l.b16 %v1462
  %v1495 = vunpack.c.l.b16 %v1463
  %v1496 = vunpack.c.l.b16 %v1464
  %v1497 = vunpack.c.l.b16 %v1465
  %v1498 = vunpack.c.l.b16 %v1466
  %v1499 = vunpack.c.l.b16 %v1467
  %v1500 = vunpack.c.l.b16 %v1468
  %v1501 = vunpack.c.l.b16 %v1469
  %v1502 = vpack.c.b16 %v1487, %v1486
  %v1503 = vpack.c.b16 %v1489, %v1488
  %v1504 = vpack.c.b16 %v1491, %v1490
  %v1505 = vpack.c.b16 %v1493, %v1492
  %v1506 = vpack.c.b16 %v1495, %v1494
  %v1507 = vpack.c.b16 %v1497, %v1496
  %v1508 = vpack.c.b16 %v1499, %v1498
  %v1509 = vpack.c.b16 %v1501, %v1500
  %1518 = vmatprep.subr.bf16.mxu0 0
  %1519 = vmatpush1.bf16.msra.mxu0 %v1509
  %1520 = vmatprep.subr.bf16.mxu0 0
  %1521 = vmatpush1.bf16.msra.mxu0 %v1508
  %1522 = vmatprep.subr.bf16.mxu0 0
  %1523 = vmatpush1.bf16.msra.mxu0 %v1507
  %1524 = vmatprep.subr.bf16.mxu0 0
  %1525 = vmatpush1.bf16.msra.mxu0 %v1506
  %1526 = vmatprep.subr.bf16.mxu0 0
  %1527 = vmatpush1.bf16.msra.mxu0 %v1505
  %1528 = vmatprep.subr.bf16.mxu0 0
  %1529 = vmatpush1.bf16.msra.mxu0 %v1504
  %1530 = vmatprep.subr.bf16.mxu0 0
  %1531 = vmatpush1.bf16.msra.mxu0 %v1503
  %1532 = vmatprep.subr.bf16.mxu0 0
  %1533 = vmatpush1.bf16.msra.mxu0 %v1502
  %1534 = vmatprep.subr.bf16.mxu0 0
  %1535 = vmatpush2.bf16.msra.mxu0 0
  %1536 = vmatprep.subr.bf16.mxu0 0
  %1537 = vmatpush2.bf16.msra.mxu0 0
  %1538 = vmatprep.subr.bf16.mxu0 0
  %1539 = vmatpush2.bf16.msra.mxu0 0
  %1540 = vmatprep.subr.bf16.mxu0 0
  %1541 = vmatpush2.bf16.msra.mxu0 0
  %1542 = vmatprep.subr.bf16.mxu0 0
  %1543 = vmatpush2.bf16.msra.mxu0 0
  %1544 = vmatprep.subr.bf16.mxu0 0
  %1545 = vmatpush2.bf16.msra.mxu0 0
  %1546 = vmatprep.subr.bf16.mxu0 0
  %1547 = vmatpush2.bf16.msra.mxu0 0
  %1548 = vmatprep.subr.bf16.mxu0 0
  %1549 = vmatpush2.bf16.msra.mxu0 0
  %1550 = vmatprep.mubr.bf16.mxu0 0
  %1551 = vmatmul.mubr.bf16.gmra.mxu0 %v632
  %v1552 = vpop.f32.mrf.mxu0
  %v1553 = vadd.f32 0.0, %v1552
  %v1554 = vpop.f32.mrf.mxu0
  %v1555 = vpop.f32.mrf.mxu0
  %v1556 = vadd.f32 0.0, %v1555
  %v1557 = vpop.f32.mrf.mxu0
  %1558 = vmatprep.mubr.bf16.mxu0 0
  %1559 = vmatmul.mubr.bf16.gmra.mxu0 %v633
  %v1560 = vpop.f32.mrf.mxu0
  %v1561 = vadd.f32 0.0, %v1560
  %v1562 = vpop.f32.mrf.mxu0
  %v1563 = vpop.f32.mrf.mxu0
  %v1564 = vadd.f32 0.0, %v1563
  %v1565 = vpop.f32.mrf.mxu0
  %1566 = vdwg.mxu0
  %v1567 = vadd.f32 %v1449, %v1553
  %v1568 = vadd.f32 %v1450, %v1556
  %v1569 = vadd.f32 %v1451, %v1561
  %v1570 = vadd.f32 %v1452, %v1564
  %s1571 = scalar_lea.vmem %s4, 512
  %v1572 = vld [vmem:[%s1571] sm:$0xf]
  %v1573 = vld [vmem:[%s1571 + $0x4] sm:$0xf]
  %v1574 = vld [vmem:[%s1571 + $0x8] sm:$0xf]
  %v1575 = vld [vmem:[%s1571 + $0xc] sm:$0xf]
  %v1576 = vld [vmem:[%s1571 + $0x10] sm:$0xf]
  %v1577 = vld [vmem:[%s1571 + $0x14] sm:$0xf]
  %v1578 = vld [vmem:[%s1571 + $0x18] sm:$0xf]
  %v1579 = vld [vmem:[%s1571 + $0x1c] sm:$0xf]
  %v1580 = vld [vmem:[%s1571 + $0x20] sm:$0xf]
  %v1581 = vld [vmem:[%s1571 + $0x24] sm:$0xf]
  %v1582 = vld [vmem:[%s1571 + $0x28] sm:$0xf]
  %v1583 = vld [vmem:[%s1571 + $0x2c] sm:$0xf]
  %v1584 = vld [vmem:[%s1571 + $0x30] sm:$0xf]
  %v1585 = vld [vmem:[%s1571 + $0x34] sm:$0xf]
  %v1586 = vld [vmem:[%s1571 + $0x38] sm:$0xf]
  %v1587 = vld [vmem:[%s1571 + $0x3c] sm:$0xf]
  %v1604 = vunpack.c.l.b16 %v1572
  %v1605 = vunpack.c.l.b16 %v1573
  %v1606 = vunpack.c.l.b16 %v1574
  %v1607 = vunpack.c.l.b16 %v1575
  %v1608 = vunpack.c.l.b16 %v1576
  %v1609 = vunpack.c.l.b16 %v1577
  %v1610 = vunpack.c.l.b16 %v1578
  %v1611 = vunpack.c.l.b16 %v1579
  %v1612 = vunpack.c.l.b16 %v1580
  %v1613 = vunpack.c.l.b16 %v1581
  %v1614 = vunpack.c.l.b16 %v1582
  %v1615 = vunpack.c.l.b16 %v1583
  %v1616 = vunpack.c.l.b16 %v1584
  %v1617 = vunpack.c.l.b16 %v1585
  %v1618 = vunpack.c.l.b16 %v1586
  %v1619 = vunpack.c.l.b16 %v1587
  %v1620 = vpack.c.b16 %v1605, %v1604
  %v1621 = vpack.c.b16 %v1607, %v1606
  %v1622 = vpack.c.b16 %v1609, %v1608
  %v1623 = vpack.c.b16 %v1611, %v1610
  %v1624 = vpack.c.b16 %v1613, %v1612
  %v1625 = vpack.c.b16 %v1615, %v1614
  %v1626 = vpack.c.b16 %v1617, %v1616
  %v1627 = vpack.c.b16 %v1619, %v1618
  %1636 = vmatprep.subr.bf16.mxu0 0
  %1637 = vmatpush1.bf16.msra.mxu0 %v1627
  %1638 = vmatprep.subr.bf16.mxu0 0
  %1639 = vmatpush1.bf16.msra.mxu0 %v1626
  %1640 = vmatprep.subr.bf16.mxu0 0
  %1641 = vmatpush1.bf16.msra.mxu0 %v1625
  %1642 = vmatprep.subr.bf16.mxu0 0
  %1643 = vmatpush1.bf16.msra.mxu0 %v1624
  %1644 = vmatprep.subr.bf16.mxu0 0
  %1645 = vmatpush1.bf16.msra.mxu0 %v1623
  %1646 = vmatprep.subr.bf16.mxu0 0
  %1647 = vmatpush1.bf16.msra.mxu0 %v1622
  %1648 = vmatprep.subr.bf16.mxu0 0
  %1649 = vmatpush1.bf16.msra.mxu0 %v1621
  %1650 = vmatprep.subr.bf16.mxu0 0
  %1651 = vmatpush1.bf16.msra.mxu0 %v1620
  %1652 = vmatprep.subr.bf16.mxu0 0
  %1653 = vmatpush2.bf16.msra.mxu0 0
  %1654 = vmatprep.subr.bf16.mxu0 0
  %1655 = vmatpush2.bf16.msra.mxu0 0
  %1656 = vmatprep.subr.bf16.mxu0 0
  %1657 = vmatpush2.bf16.msra.mxu0 0
  %1658 = vmatprep.subr.bf16.mxu0 0
  %1659 = vmatpush2.bf16.msra.mxu0 0
  %1660 = vmatprep.subr.bf16.mxu0 0
  %1661 = vmatpush2.bf16.msra.mxu0 0
  %1662 = vmatprep.subr.bf16.mxu0 0
  %1663 = vmatpush2.bf16.msra.mxu0 0
  %1664 = vmatprep.subr.bf16.mxu0 0
  %1665 = vmatpush2.bf16.msra.mxu0 0
  %1666 = vmatprep.subr.bf16.mxu0 0
  %1667 = vmatpush2.bf16.msra.mxu0 0
  %1668 = vmatprep.mubr.bf16.mxu0 0
  %1669 = vmatmul.mubr.bf16.gmra.mxu0 %v634
  %v1670 = vpop.f32.mrf.mxu0
  %v1671 = vadd.f32 0.0, %v1670
  %v1672 = vpop.f32.mrf.mxu0
  %v1673 = vpop.f32.mrf.mxu0
  %v1674 = vadd.f32 0.0, %v1673
  %v1675 = vpop.f32.mrf.mxu0
  %1676 = vmatprep.mubr.bf16.mxu0 0
  %1677 = vmatmul.mubr.bf16.gmra.mxu0 %v635
  %v1678 = vpop.f32.mrf.mxu0
  %v1679 = vadd.f32 0.0, %v1678
  %v1680 = vpop.f32.mrf.mxu0
  %v1681 = vpop.f32.mrf.mxu0
  %v1682 = vadd.f32 0.0, %v1681
  %v1683 = vpop.f32.mrf.mxu0
  %1684 = vdwg.mxu0
  %v1685 = vadd.f32 %v1567, %v1671
  %v1686 = vadd.f32 %v1568, %v1674
  %v1687 = vadd.f32 %v1569, %v1679
  %v1688 = vadd.f32 %v1570, %v1682
  %v1689 = vld [vmem:[%s5] sm:$0x1]
  %v1691 = vlaneseq
  %v1692 = vshrl.u32 %v1691, 7
  %v1693 = vsub.s32 0, %v1692
  %v1694 = vrot.slane %v1689, %v1693
  %v1696 = vmul.f32 %v1685, %v1694
  %v1697 = vmul.f32 %v1686, %v1694
  %v1698 = vmul.f32 %v1687, %v1694
  %v1699 = vmul.f32 %v1688, %v1694
  %v1700 = vld [vmem:[%s6] sm:$0x1]
  %v1702 = vlaneseq
  %v1703 = vshrl.u32 %v1702, 7
  %v1704 = vsub.s32 0, %v1703
  %v1705 = vrot.slane %v1700, %v1704
  %v1707 = vadd.f32 %v1696, %v1705
  %v1708 = vadd.f32 %v1697, %v1705
  %v1709 = vadd.f32 %v1698, %v1705
  %v1710 = vadd.f32 %v1699, %v1705
  %vm1711 = vcmp.gt.f32.partialorder %v1707, 0.0
  %vm1712 = vcmp.gt.f32.partialorder %v1708, 0.0
  %vm1713 = vcmp.gt.f32.partialorder %v1709, 0.0
  %vm1714 = vcmp.gt.f32.partialorder %v1710, 0.0
  %v1715 = vmul.f32 %v1707, 0.01
  %v1716 = vmul.f32 %v1708, 0.01
  %v1717 = vmul.f32 %v1709, 0.01
  %v1718 = vmul.f32 %v1710, 0.01
  %v1719 = vsel %vm1711, %v1707, %v1715
  %v1720 = vsel %vm1712, %v1708, %v1716
  %v1721 = vsel %vm1713, %v1709, %v1717
  %v1722 = vsel %vm1714, %v1710, %v1718
  %v1723 = vmax.f32 %v1719, 0.0
  %v1724 = vmax.f32 %v1720, 0.0
  %v1725 = vmax.f32 %v1721, 0.0
  %v1726 = vmax.f32 %v1722, 0.0
  %v1727 = vpack.c.bf16 %v1724, %v1723
  %v1728 = vpack.c.bf16 %v1726, %v1725
  %v1729 = vld [vmem:[%s7] sm:$0xf]
  %v1730 = vld [vmem:[%s7 + $0x4] sm:$0xf]
  %v1731 = vld [vmem:[%s7 + $0x8] sm:$0xf]
  %v1732 = vld [vmem:[%s7 + $0xc] sm:$0xf]
  %v1733 = vld [vmem:[%s7 + $0x10] sm:$0xf]
  %v1734 = vld [vmem:[%s7 + $0x14] sm:$0xf]
  %v1735 = vld [vmem:[%s7 + $0x18] sm:$0xf]
  %v1736 = vld [vmem:[%s7 + $0x1c] sm:$0xf]
  %v1737 = vld [vmem:[%s7 + $0x20] sm:$0xf]
  %v1738 = vld [vmem:[%s7 + $0x24] sm:$0xf]
  %v1739 = vld [vmem:[%s7 + $0x28] sm:$0xf]
  %v1740 = vld [vmem:[%s7 + $0x2c] sm:$0xf]
  %v1741 = vld [vmem:[%s7 + $0x30] sm:$0xf]
  %v1742 = vld [vmem:[%s7 + $0x34] sm:$0xf]
  %v1743 = vld [vmem:[%s7 + $0x38] sm:$0xf]
  %v1744 = vld [vmem:[%s7 + $0x3c] sm:$0xf]
  %s1745 = scalar_lea.vmem %s7, 64
  %v1746 = vld [vmem:[%s1745] sm:$0xf]
  %v1747 = vld [vmem:[%s1745 + $0x4] sm:$0xf]
  %v1748 = vld [vmem:[%s1745 + $0x8] sm:$0xf]
  %v1749 = vld [vmem:[%s1745 + $0xc] sm:$0xf]
  %v1750 = vld [vmem:[%s1745 + $0x10] sm:$0xf]
  %v1751 = vld [vmem:[%s1745 + $0x14] sm:$0xf]
  %v1752 = vld [vmem:[%s1745 + $0x18] sm:$0xf]
  %v1753 = vld [vmem:[%s1745 + $0x1c] sm:$0xf]
  %v1754 = vld [vmem:[%s1745 + $0x20] sm:$0xf]
  %v1755 = vld [vmem:[%s1745 + $0x24] sm:$0xf]
  %v1756 = vld [vmem:[%s1745 + $0x28] sm:$0xf]
  %v1757 = vld [vmem:[%s1745 + $0x2c] sm:$0xf]
  %v1758 = vld [vmem:[%s1745 + $0x30] sm:$0xf]
  %v1759 = vld [vmem:[%s1745 + $0x34] sm:$0xf]
  %v1760 = vld [vmem:[%s1745 + $0x38] sm:$0xf]
  %v1761 = vld [vmem:[%s1745 + $0x3c] sm:$0xf]
  %v1763 = vrot.slane %v1727, 4
  %v1781 = vunpack.c.l.b16 %v1746
  %v1782 = vunpack.c.l.b16 %v1747
  %v1783 = vunpack.c.l.b16 %v1748
  %v1784 = vunpack.c.l.b16 %v1749
  %v1785 = vunpack.c.l.b16 %v1750
  %v1786 = vunpack.c.l.b16 %v1751
  %v1787 = vunpack.c.l.b16 %v1752
  %v1788 = vunpack.c.l.b16 %v1753
  %v1789 = vunpack.c.l.b16 %v1754
  %v1790 = vunpack.c.l.b16 %v1755
  %v1791 = vunpack.c.l.b16 %v1756
  %v1792 = vunpack.c.l.b16 %v1757
  %v1793 = vunpack.c.l.b16 %v1758
  %v1794 = vunpack.c.l.b16 %v1759
  %v1795 = vunpack.c.l.b16 %v1760
  %v1796 = vunpack.c.l.b16 %v1761
  %v1797 = vpack.c.b16 %v1782, %v1781
  %v1798 = vpack.c.b16 %v1784, %v1783
  %v1799 = vpack.c.b16 %v1786, %v1785
  %v1800 = vpack.c.b16 %v1788, %v1787
  %v1801 = vpack.c.b16 %v1790, %v1789
  %v1802 = vpack.c.b16 %v1792, %v1791
  %v1803 = vpack.c.b16 %v1794, %v1793
  %v1804 = vpack.c.b16 %v1796, %v1795
  %1813 = vmatprep.subr.bf16.mxu0 0
  %1814 = vmatpush1.bf16.msra.mxu0 %v1804
  %1815 = vmatprep.subr.bf16.mxu0 0
  %1816 = vmatpush1.bf16.msra.mxu0 %v1803
  %1817 = vmatprep.subr.bf16.mxu0 0
  %1818 = vmatpush1.bf16.msra.mxu0 %v1802
  %1819 = vmatprep.subr.bf16.mxu0 0
  %1820 = vmatpush1.bf16.msra.mxu0 %v1801
  %1821 = vmatprep.subr.bf16.mxu0 0
  %1822 = vmatpush1.bf16.msra.mxu0 %v1800
  %1823 = vmatprep.subr.bf16.mxu0 0
  %1824 = vmatpush1.bf16.msra.mxu0 %v1799
  %1825 = vmatprep.subr.bf16.mxu0 0
  %1826 = vmatpush1.bf16.msra.mxu0 %v1798
  %1827 = vmatprep.subr.bf16.mxu0 0
  %1828 = vmatpush1.bf16.msra.mxu0 %v1797
  %1829 = vmatprep.subr.bf16.mxu0 0
  %1830 = vmatpush2.bf16.msra.mxu0 0
  %1831 = vmatprep.subr.bf16.mxu0 0
  %1832 = vmatpush2.bf16.msra.mxu0 0
  %1833 = vmatprep.subr.bf16.mxu0 0
  %1834 = vmatpush2.bf16.msra.mxu0 0
  %1835 = vmatprep.subr.bf16.mxu0 0
  %1836 = vmatpush2.bf16.msra.mxu0 0
  %1837 = vmatprep.subr.bf16.mxu0 0
  %1838 = vmatpush2.bf16.msra.mxu0 0
  %1839 = vmatprep.subr.bf16.mxu0 0
  %1840 = vmatpush2.bf16.msra.mxu0 0
  %1841 = vmatprep.subr.bf16.mxu0 0
  %1842 = vmatpush2.bf16.msra.mxu0 0
  %1843 = vmatprep.subr.bf16.mxu0 0
  %1844 = vmatpush2.bf16.msra.mxu0 0
  %1845 = vmatprep.mubr.bf16.mxu0 0
  %1846 = vmatmul.mubr.bf16.gmra.mxu0 %v1763
  %v1847 = vpop.f32.mrf.mxu0
  %v1848 = vadd.f32 0.0, %v1847
  %v1849 = vpop.f32.mrf.mxu0
  %v1850 = vpop.f32.mrf.mxu0
  %v1851 = vpop.f32.mrf.mxu0
  %1852 = vdwg.mxu0
  %v1869 = vunpack.c.l.b16 %v1729
  %v1870 = vunpack.c.l.b16 %v1730
  %v1871 = vunpack.c.l.b16 %v1731
  %v1872 = vunpack.c.l.b16 %v1732
  %v1873 = vunpack.c.l.b16 %v1733
  %v1874 = vunpack.c.l.b16 %v1734
  %v1875 = vunpack.c.l.b16 %v1735
  %v1876 = vunpack.c.l.b16 %v1736
  %v1877 = vunpack.c.l.b16 %v1737
  %v1878 = vunpack.c.l.b16 %v1738
  %v1879 = vunpack.c.l.b16 %v1739
  %v1880 = vunpack.c.l.b16 %v1740
  %v1881 = vunpack.c.l.b16 %v1741
  %v1882 = vunpack.c.l.b16 %v1742
  %v1883 = vunpack.c.l.b16 %v1743
  %v1884 = vunpack.c.l.b16 %v1744
  %v1885 = vpack.c.b16 %v1870, %v1869
  %v1886 = vpack.c.b16 %v1872, %v1871
  %v1887 = vpack.c.b16 %v1874, %v1873
  %v1888 = vpack.c.b16 %v1876, %v1875
  %v1889 = vpack.c.b16 %v1878, %v1877
  %v1890 = vpack.c.b16 %v1880, %v1879
  %v1891 = vpack.c.b16 %v1882, %v1881
  %v1892 = vpack.c.b16 %v1884, %v1883
  %1901 = vmatprep.subr.bf16.mxu0 0
  %1902 = vmatpush1.bf16.msra.mxu0 %v1892
  %1903 = vmatprep.subr.bf16.mxu0 0
  %1904 = vmatpush1.bf16.msra.mxu0 %v1891
  %1905 = vmatprep.subr.bf16.mxu0 0
  %1906 = vmatpush1.bf16.msra.mxu0 %v1890
  %1907 = vmatprep.subr.bf16.mxu0 0
  %1908 = vmatpush1.bf16.msra.mxu0 %v1889
  %1909 = vmatprep.subr.bf16.mxu0 0
  %1910 = vmatpush1.bf16.msra.mxu0 %v1888
  %1911 = vmatprep.subr.bf16.mxu0 0
  %1912 = vmatpush1.bf16.msra.mxu0 %v1887
  %1913 = vmatprep.subr.bf16.mxu0 0
  %1914 = vmatpush1.bf16.msra.mxu0 %v1886
  %1915 = vmatprep.subr.bf16.mxu0 0
  %1916 = vmatpush1.bf16.msra.mxu0 %v1885
  %1917 = vmatprep.subr.bf16.mxu0 0
  %1918 = vmatpush2.bf16.msra.mxu0 0
  %1919 = vmatprep.subr.bf16.mxu0 0
  %1920 = vmatpush2.bf16.msra.mxu0 0
  %1921 = vmatprep.subr.bf16.mxu0 0
  %1922 = vmatpush2.bf16.msra.mxu0 0
  %1923 = vmatprep.subr.bf16.mxu0 0
  %1924 = vmatpush2.bf16.msra.mxu0 0
  %1925 = vmatprep.subr.bf16.mxu0 0
  %1926 = vmatpush2.bf16.msra.mxu0 0
  %1927 = vmatprep.subr.bf16.mxu0 0
  %1928 = vmatpush2.bf16.msra.mxu0 0
  %1929 = vmatprep.subr.bf16.mxu0 0
  %1930 = vmatpush2.bf16.msra.mxu0 0
  %1931 = vmatprep.subr.bf16.mxu0 0
  %1932 = vmatpush2.bf16.msra.mxu0 0
  %1933 = vmatprep.mubr.bf16.mxu0 0
  %1934 = vmatmul.mubr.bf16.gmra.mxu0 %v1727
  %v1935 = vpop.f32.mrf.mxu0
  %v1936 = vadd.f32 %v1848, %v1935
  %v1937 = vpop.f32.mrf.mxu0
  %v1938 = vpop.f32.mrf.mxu0
  %v1939 = vpop.f32.mrf.mxu0
  %1940 = vdwg.mxu0
  %s1941 = scalar_lea.vmem %s7, 128
  %v1942 = vld [vmem:[%s1941] sm:$0xf]
  %v1943 = vld [vmem:[%s1941 + $0x4] sm:$0xf]
  %v1944 = vld [vmem:[%s1941 + $0x8] sm:$0xf]
  %v1945 = vld [vmem:[%s1941 + $0xc] sm:$0xf]
  %v1946 = vld [vmem:[%s1941 + $0x10] sm:$0xf]
  %v1947 = vld [vmem:[%s1941 + $0x14] sm:$0xf]
  %v1948 = vld [vmem:[%s1941 + $0x18] sm:$0xf]
  %v1949 = vld [vmem:[%s1941 + $0x1c] sm:$0xf]
  %v1950 = vld [vmem:[%s1941 + $0x20] sm:$0xf]
  %v1951 = vld [vmem:[%s1941 + $0x24] sm:$0xf]
  %v1952 = vld [vmem:[%s1941 + $0x28] sm:$0xf]
  %v1953 = vld [vmem:[%s1941 + $0x2c] sm:$0xf]
  %v1954 = vld [vmem:[%s1941 + $0x30] sm:$0xf]
  %v1955 = vld [vmem:[%s1941 + $0x34] sm:$0xf]
  %v1956 = vld [vmem:[%s1941 + $0x38] sm:$0xf]
  %v1957 = vld [vmem:[%s1941 + $0x3c] sm:$0xf]
  %v1974 = vunpack.c.l.b16 %v1942
  %v1975 = vunpack.c.l.b16 %v1943
  %v1976 = vunpack.c.l.b16 %v1944
  %v1977 = vunpack.c.l.b16 %v1945
  %v1978 = vunpack.c.l.b16 %v1946
  %v1979 = vunpack.c.l.b16 %v1947
  %v1980 = vunpack.c.l.b16 %v1948
  %v1981 = vunpack.c.l.b16 %v1949
  %v1982 = vunpack.c.l.b16 %v1950
  %v1983 = vunpack.c.l.b16 %v1951
  %v1984 = vunpack.c.l.b16 %v1952
  %v1985 = vunpack.c.l.b16 %v1953
  %v1986 = vunpack.c.l.b16 %v1954
  %v1987 = vunpack.c.l.b16 %v1955
  %v1988 = vunpack.c.l.b16 %v1956
  %v1989 = vunpack.c.l.b16 %v1957
  %v1990 = vpack.c.b16 %v1975, %v1974
  %v1991 = vpack.c.b16 %v1977, %v1976
  %v1992 = vpack.c.b16 %v1979, %v1978
  %v1993 = vpack.c.b16 %v1981, %v1980
  %v1994 = vpack.c.b16 %v1983, %v1982
  %v1995 = vpack.c.b16 %v1985, %v1984
  %v1996 = vpack.c.b16 %v1987, %v1986
  %v1997 = vpack.c.b16 %v1989, %v1988
  %2006 = vmatprep.subr.bf16.mxu0 0
  %2007 = vmatpush1.bf16.msra.mxu0 %v1997
  %2008 = vmatprep.subr.bf16.mxu0 0
  %2009 = vmatpush1.bf16.msra.mxu0 %v1996
  %2010 = vmatprep.subr.bf16.mxu0 0
  %2011 = vmatpush1.bf16.msra.mxu0 %v1995
  %2012 = vmatprep.subr.bf16.mxu0 0
  %2013 = vmatpush1.bf16.msra.mxu0 %v1994
  %2014 = vmatprep.subr.bf16.mxu0 0
  %2015 = vmatpush1.bf16.msra.mxu0 %v1993
  %2016 = vmatprep.subr.bf16.mxu0 0
  %2017 = vmatpush1.bf16.msra.mxu0 %v1992
  %2018 = vmatprep.subr.bf16.mxu0 0
  %2019 = vmatpush1.bf16.msra.mxu0 %v1991
  %2020 = vmatprep.subr.bf16.mxu0 0
  %2021 = vmatpush1.bf16.msra.mxu0 %v1990
  %2022 = vmatprep.subr.bf16.mxu0 0
  %2023 = vmatpush2.bf16.msra.mxu0 0
  %2024 = vmatprep.subr.bf16.mxu0 0
  %2025 = vmatpush2.bf16.msra.mxu0 0
  %2026 = vmatprep.subr.bf16.mxu0 0
  %2027 = vmatpush2.bf16.msra.mxu0 0
  %2028 = vmatprep.subr.bf16.mxu0 0
  %2029 = vmatpush2.bf16.msra.mxu0 0
  %2030 = vmatprep.subr.bf16.mxu0 0
  %2031 = vmatpush2.bf16.msra.mxu0 0
  %2032 = vmatprep.subr.bf16.mxu0 0
  %2033 = vmatpush2.bf16.msra.mxu0 0
  %2034 = vmatprep.subr.bf16.mxu0 0
  %2035 = vmatpush2.bf16.msra.mxu0 0
  %2036 = vmatprep.subr.bf16.mxu0 0
  %2037 = vmatpush2.bf16.msra.mxu0 0
  %2038 = vmatprep.mubr.bf16.mxu0 0
  %2039 = vmatmul.mubr.bf16.gmra.mxu0 %v1728
  %v2040 = vpop.f32.mrf.mxu0
  %v2041 = vadd.f32 0.0, %v2040
  %v2042 = vpop.f32.mrf.mxu0
  %v2043 = vpop.f32.mrf.mxu0
  %v2044 = vpop.f32.mrf.mxu0
  %2045 = vdwg.mxu0
  %v2046 = vadd.f32 %v1936, %v2041
  %s2047 = scalar_lea.vmem %s7, 192
  %v2048 = vld [vmem:[%s2047] sm:$0xf]
  %v2049 = vld [vmem:[%s2047 + $0x4] sm:$0xf]
  %v2050 = vld [vmem:[%s2047 + $0x8] sm:$0xf]
  %v2051 = vld [vmem:[%s2047 + $0xc] sm:$0xf]
  %v2052 = vld [vmem:[%s2047 + $0x10] sm:$0xf]
  %v2053 = vld [vmem:[%s2047 + $0x14] sm:$0xf]
  %v2054 = vld [vmem:[%s2047 + $0x18] sm:$0xf]
  %v2055 = vld [vmem:[%s2047 + $0x1c] sm:$0xf]
  %v2056 = vld [vmem:[%s2047 + $0x20] sm:$0xf]
  %v2057 = vld [vmem:[%s2047 + $0x24] sm:$0xf]
  %v2058 = vld [vmem:[%s2047 + $0x28] sm:$0xf]
  %v2059 = vld [vmem:[%s2047 + $0x2c] sm:$0xf]
  %v2060 = vld [vmem:[%s2047 + $0x30] sm:$0xf]
  %v2061 = vld [vmem:[%s2047 + $0x34] sm:$0xf]
  %v2062 = vld [vmem:[%s2047 + $0x38] sm:$0xf]
  %v2063 = vld [vmem:[%s2047 + $0x3c] sm:$0xf]
  %v2065 = vrot.slane %v1728, 4
  %v2083 = vunpack.c.l.b16 %v2048
  %v2084 = vunpack.c.l.b16 %v2049
  %v2085 = vunpack.c.l.b16 %v2050
  %v2086 = vunpack.c.l.b16 %v2051
  %v2087 = vunpack.c.l.b16 %v2052
  %v2088 = vunpack.c.l.b16 %v2053
  %v2089 = vunpack.c.l.b16 %v2054
  %v2090 = vunpack.c.l.b16 %v2055
  %v2091 = vunpack.c.l.b16 %v2056
  %v2092 = vunpack.c.l.b16 %v2057
  %v2093 = vunpack.c.l.b16 %v2058
  %v2094 = vunpack.c.l.b16 %v2059
  %v2095 = vunpack.c.l.b16 %v2060
  %v2096 = vunpack.c.l.b16 %v2061
  %v2097 = vunpack.c.l.b16 %v2062
  %v2098 = vunpack.c.l.b16 %v2063
  %v2099 = vpack.c.b16 %v2084, %v2083
  %v2100 = vpack.c.b16 %v2086, %v2085
  %v2101 = vpack.c.b16 %v2088, %v2087
  %v2102 = vpack.c.b16 %v2090, %v2089
  %v2103 = vpack.c.b16 %v2092, %v2091
  %v2104 = vpack.c.b16 %v2094, %v2093
  %v2105 = vpack.c.b16 %v2096, %v2095
  %v2106 = vpack.c.b16 %v2098, %v2097
  %2115 = vmatprep.subr.bf16.mxu0 0
  %2116 = vmatpush1.bf16.msra.mxu0 %v2106
  %2117 = vmatprep.subr.bf16.mxu0 0
  %2118 = vmatpush1.bf16.msra.mxu0 %v2105
  %2119 = vmatprep.subr.bf16.mxu0 0
  %2120 = vmatpush1.bf16.msra.mxu0 %v2104
  %2121 = vmatprep.subr.bf16.mxu0 0
  %2122 = vmatpush1.bf16.msra.mxu0 %v2103
  %2123 = vmatprep.subr.bf16.mxu0 0
  %2124 = vmatpush1.bf16.msra.mxu0 %v2102
  %2125 = vmatprep.subr.bf16.mxu0 0
  %2126 = vmatpush1.bf16.msra.mxu0 %v2101
  %2127 = vmatprep.subr.bf16.mxu0 0
  %2128 = vmatpush1.bf16.msra.mxu0 %v2100
  %2129 = vmatprep.subr.bf16.mxu0 0
  %2130 = vmatpush1.bf16.msra.mxu0 %v2099
  %2131 = vmatprep.subr.bf16.mxu0 0
  %2132 = vmatpush2.bf16.msra.mxu0 0
  %2133 = vmatprep.subr.bf16.mxu0 0
  %2134 = vmatpush2.bf16.msra.mxu0 0
  %2135 = vmatprep.subr.bf16.mxu0 0
  %2136 = vmatpush2.bf16.msra.mxu0 0
  %2137 = vmatprep.subr.bf16.mxu0 0
  %2138 = vmatpush2.bf16.msra.mxu0 0
  %2139 = vmatprep.subr.bf16.mxu0 0
  %2140 = vmatpush2.bf16.msra.mxu0 0
  %2141 = vmatprep.subr.bf16.mxu0 0
  %2142 = vmatpush2.bf16.msra.mxu0 0
  %2143 = vmatprep.subr.bf16.mxu0 0
  %2144 = vmatpush2.bf16.msra.mxu0 0
  %2145 = vmatprep.subr.bf16.mxu0 0
  %2146 = vmatpush2.bf16.msra.mxu0 0
  %2147 = vmatprep.mubr.bf16.mxu0 0
  %2148 = vmatmul.mubr.bf16.gmra.mxu0 %v2065
  %v2149 = vpop.f32.mrf.mxu0
  %v2150 = vadd.f32 0.0, %v2149
  %v2151 = vpop.f32.mrf.mxu0
  %v2152 = vpop.f32.mrf.mxu0
  %v2153 = vpop.f32.mrf.mxu0
  %2154 = vdwg.mxu0
  %v2155 = vadd.f32 %v2046, %v2150
  %v2156 = vld [vmem:[%s8] sm:$0x1]
  %v2158 = vlaneseq
  %v2159 = vshrl.u32 %v2158, 7
  %v2160 = vsub.s32 0, %v2159
  %v2161 = vrot.slane %v2156, %v2160
  %v2163 = vadd.f32 %v2155, %v2161
  %v2164 = vmax.f32 %v2163, 0.0
  %v2165 = vpack.c.bf16 %v2164, %v2164
  %v2166 = vld [vmem:[%s9] sm:$0xf]
  %v2167 = vld [vmem:[%s9 + $0x4] sm:$0xf]
  %v2168 = vld [vmem:[%s9 + $0x8] sm:$0xf]
  %v2169 = vld [vmem:[%s9 + $0xc] sm:$0xf]
  %v2170 = vld [vmem:[%s9 + $0x10] sm:$0xf]
  %v2171 = vld [vmem:[%s9 + $0x14] sm:$0xf]
  %v2172 = vld [vmem:[%s9 + $0x18] sm:$0xf]
  %v2173 = vld [vmem:[%s9 + $0x1c] sm:$0xf]
  %v2174 = vld [vmem:[%s9 + $0x20] sm:$0xf]
  %v2175 = vld [vmem:[%s9 + $0x24] sm:$0xf]
  %v2176 = vld [vmem:[%s9 + $0x28] sm:$0xf]
  %v2177 = vld [vmem:[%s9 + $0x2c] sm:$0xf]
  %v2178 = vld [vmem:[%s9 + $0x30] sm:$0xf]
  %v2179 = vld [vmem:[%s9 + $0x34] sm:$0xf]
  %v2180 = vld [vmem:[%s9 + $0x38] sm:$0xf]
  %v2181 = vld [vmem:[%s9 + $0x3c] sm:$0xf]
  %v2182 = vld [vmem:[%s10] sm:$0x1]
  %v2184 = vlaneseq
  %v2185 = vshrl.u32 %v2184, 7
  %v2186 = vsub.s32 0, %v2185
  %v2187 = vrot.slane %v2182, %v2186
  %v2205 = vunpack.c.l.b16 %v2166
  %v2206 = vunpack.c.l.b16 %v2167
  %v2207 = vunpack.c.l.b16 %v2168
  %v2208 = vunpack.c.l.b16 %v2169
  %v2209 = vunpack.c.l.b16 %v2170
  %v2210 = vunpack.c.l.b16 %v2171
  %v2211 = vunpack.c.l.b16 %v2172
  %v2212 = vunpack.c.l.b16 %v2173
  %v2213 = vunpack.c.l.b16 %v2174
  %v2214 = vunpack.c.l.b16 %v2175
  %v2215 = vunpack.c.l.b16 %v2176
  %v2216 = vunpack.c.l.b16 %v2177
  %v2217 = vunpack.c.l.b16 %v2178
  %v2218 = vunpack.c.l.b16 %v2179
  %v2219 = vunpack.c.l.b16 %v2180
  %v2220 = vunpack.c.l.b16 %v2181
  %v2221 = vpack.c.b16 %v2206, %v2205
  %v2222 = vpack.c.b16 %v2208, %v2207
  %v2223 = vpack.c.b16 %v2210, %v2209
  %v2224 = vpack.c.b16 %v2212, %v2211
  %v2225 = vpack.c.b16 %v2214, %v2213
  %v2226 = vpack.c.b16 %v2216, %v2215
  %v2227 = vpack.c.b16 %v2218, %v2217
  %v2228 = vpack.c.b16 %v2220, %v2219
  %2237 = vmatprep.subr.bf16.mxu0 0
  %2238 = vmatpush1.bf16.msra.mxu0 %v2228
  %2239 = vmatprep.subr.bf16.mxu0 0
  %2240 = vmatpush1.bf16.msra.mxu0 %v2227
  %2241 = vmatprep.subr.bf16.mxu0 0
  %2242 = vmatpush1.bf16.msra.mxu0 %v2226
  %2243 = vmatprep.subr.bf16.mxu0 0
  %2244 = vmatpush1.bf16.msra.mxu0 %v2225
  %2245 = vmatprep.subr.bf16.mxu0 0
  %2246 = vmatpush1.bf16.msra.mxu0 %v2224
  %2247 = vmatprep.subr.bf16.mxu0 0
  %2248 = vmatpush1.bf16.msra.mxu0 %v2223
  %2249 = vmatprep.subr.bf16.mxu0 0
  %2250 = vmatpush1.bf16.msra.mxu0 %v2222
  %2251 = vmatprep.subr.bf16.mxu0 0
  %2252 = vmatpush1.bf16.msra.mxu0 %v2221
  %2253 = vmatprep.subr.bf16.mxu0 0
  %2254 = vmatpush2.bf16.msra.mxu0 0
  %2255 = vmatprep.subr.bf16.mxu0 0
  %2256 = vmatpush2.bf16.msra.mxu0 0
  %2257 = vmatprep.subr.bf16.mxu0 0
  %2258 = vmatpush2.bf16.msra.mxu0 0
  %2259 = vmatprep.subr.bf16.mxu0 0
  %2260 = vmatpush2.bf16.msra.mxu0 0
  %2261 = vmatprep.subr.bf16.mxu0 0
  %2262 = vmatpush2.bf16.msra.mxu0 0
  %2263 = vmatprep.subr.bf16.mxu0 0
  %2264 = vmatpush2.bf16.msra.mxu0 0
  %2265 = vmatprep.subr.bf16.mxu0 0
  %2266 = vmatpush2.bf16.msra.mxu0 0
  %2267 = vmatprep.subr.bf16.mxu0 0
  %2268 = vmatpush2.bf16.msra.mxu0 0
  %2269 = vmatprep.mubr.bf16.mxu0 0
  %2270 = vmatmul.mubr.bf16.gmra.mxu0 %v2165
  %v2271 = vpop.f32.mrf.mxu0
  %v2272 = vadd.f32 %v2187, %v2271
  %v2273 = vpop.f32.mrf.mxu0
  %v2274 = vpop.f32.mrf.mxu0
  %v2275 = vpop.f32.mrf.mxu0
  %2276 = vdwg.mxu0
  %2277 = vmax.xlane.f32.xlu0 %v2272
  %v2278 = vpop.xlane.xlu0 %2277
  %v2279 = vsub.f32 %v2272, %v2278
  %v2280 = vmul.f32 %v2279, 1.442695
  %v2281 = vpow.pop %v2280
  %2282 = vadd.xlane.f32.xlu0 %v2281
  %v2283 = vpop.xlane.xlu0 %2282
  %v2284 = vrcp.pop %v2283
  %v2285 = vmul.f32 %v2281, %v2284
  %2286 = vst [vmem:[%s11] sm:$0xff] %v2285
  // Predicated region
  $region46: #{cnn_forward.1} parent=0 // pred_check
    _
  $region47: #{cnn_forward.1} parent=0 // pred_check_branch
    %2288 = sbr.rel (0) target = $region49
  $region48: #{cnn_forward.1} parent=0 // pred_region
    _
  $region49: #{cnn_forward.1} parent=0 // pred_fallthru
    _
  // Predicated region
  $region50: #{cnn_forward.1} parent=0 // pred_check
    _
  $region51: #{cnn_forward.1} parent=0 // pred_check_branch
    %2290 = sbr.rel (0) target = $region53
  $region52: #{cnn_forward.1} parent=0 // pred_region
    _
  $region53: #{cnn_forward.1} parent=0 // pred_fallthru
    _

</llo_original>
